<compile_context>
chip_gen: v7x
topology: tpu7x:2x2x1
jax: 0.10.0
libtpu: 0.0.40
codegen_flags: <defaults>
</compile_context>

<pallas_src>
import functools
import math

import jax
import jax.numpy as jnp
from jax.experimental import pallas as pl
from jax.experimental.pallas import tpu as pltpu


def _round_up(x, m):
    return ((x + m - 1) // m) * m


def _itemconv_kernel(a_ref, emb_ref, wt_ref, o_ref, x_scr, h_scr, acc_scr,
                     *, layers, blk, inv_scale):
    """Fused ItemConv forward over grid = (layers, N/blk, N/blk)."""
    l = pl.program_id(0)
    i = pl.program_id(1)
    k = pl.program_id(2)
    nk = pl.num_programs(2)

    row = pl.multiple_of(i * blk, blk)
    col = pl.multiple_of(k * blk, blk)

    # --- seed the running mean with X0 / (layers + 1).  The emb BlockSpec
    #     presents block index i whenever (l == 0, k == i), so every row tile
    #     is seeded exactly once during layer 0, before its first accumulate.
    @pl.when((l == 0) & (k == i))
    def _seed_mean():
        o_ref[pl.ds(row, blk), :] = emb_ref[...] * inv_scale

    # --- first row pass of each layer: H[col tile] = X_l[col tile] @ W_l^T,
    #     produced just in time for its first use below.  Layer 0 reads X0
    #     straight from the streamed emb tile; later layers read resident X.
    @pl.when(i == 0)
    def _produce_h_tile():
        w = wt_ref[0]

        @pl.when(l == 0)
        def _():
            h_scr[pl.ds(col, blk), :] = jnp.dot(
                emb_ref[...], w, preferred_element_type=jnp.float32)

        @pl.when(l > 0)
        def _():
            h_scr[pl.ds(col, blk), :] = jnp.dot(
                x_scr[pl.ds(col, blk), :], w,
                preferred_element_type=jnp.float32)

    # --- start of the K reduction for this row tile.
    @pl.when(k == 0)
    def _zero_acc():
        acc_scr[...] = jnp.zeros_like(acc_scr)

    # --- Y[row tile] += A[row, col] @ H[col tile]   (MXU, f32 accumulation)
    acc_scr[...] += jnp.dot(a_ref[...], h_scr[pl.ds(col, blk), :],
                            preferred_element_type=jnp.float32)

    # --- end of the K loop: stash next-layer X (un-normalized), then
    #     L2-normalize and fold into the running mean (pre-scaled by 1/(L+1)).
    @pl.when(k == nk - 1)
    def _finish_row_tile():
        y = acc_scr[...]

        @pl.when(l < layers - 1)          # next layer's input (skip last layer)
        def _():
            x_scr[pl.ds(row, blk), :] = y

        # F.normalize(y, p=2, dim=-1) == y * rsqrt(max(sum(y*y), 1e-24))
        ss = jnp.sum(y * y, axis=-1, keepdims=True)
        scale = jax.lax.rsqrt(jnp.maximum(ss, 1e-24)) * inv_scale
        o_ref[pl.ds(row, blk), :] += y * scale


def item_conv_forward(adjacency, embedding, weights, *, block_size=512):
    """JAX/Pallas equivalent of ItemConv.forward.

    adjacency: (N, N) float32 dense adjacency matrix (densified COO)
    embedding: (N, emb) float32 item embeddings
    weights:   list of (emb, emb) float32 nn.Linear weights (bias=False)
    """
    layers = len(weights)
    n, d = embedding.shape

    # Lane-dense embedding dim, tile-aligned item dim (square tiles so the
    # emb row-tile seed and the K-tile share one block size).
    d_pad = _round_up(d, 128)
    blk = _round_up(min(block_size, _round_up(n, 128)), 128)
    n_pad = _round_up(n, blk)
    n_blocks = n_pad // blk

    a = jnp.zeros((n_pad, n_pad), jnp.float32)
    a = a.at[:n, :n].set(adjacency.astype(jnp.float32))
    x0 = jnp.zeros((n_pad, d_pad), jnp.float32)
    x0 = x0.at[:n, :d].set(embedding.astype(jnp.float32))
    # Pre-transposed, zero-padded, stacked weights: (L, d_pad, d_pad).
    wt = jnp.zeros((layers, d_pad, d_pad), jnp.float32)
    for li, w in enumerate(weights):
        wt = wt.at[li, :d, :d].set(jnp.asarray(w, jnp.float32).T)

    grid = (layers, n_blocks, n_blocks)
    kernel = functools.partial(_itemconv_kernel, layers=layers, blk=blk,
                               inv_scale=1.0 / float(layers + 1))

    def emb_index_map(l, i, k):
        # layer 0, i==0 pass: follow k (feeds just-in-time H production);
        # layer 0, i>0:       stay on block i (feeds the mean seed, 1 DMA/pass);
        # layers > 0:         pinned to block 0 (no re-fetch).
        return (jnp.where(l == 0, jnp.where(i == 0, k, i), 0), 0)

    cost = pl.CostEstimate(
        flops=int(2 * layers * (n_pad * d_pad * d_pad + n_pad * n_pad * d_pad)),
        transcendentals=int(layers * n_pad),
        bytes_accessed=int(4 * (layers * n_pad * n_pad
                                + layers * d_pad * d_pad
                                + 3 * n_pad * d_pad)),
    )

    out = pl.pallas_call(
        kernel,
        out_shape=jax.ShapeDtypeStruct((n_pad, d_pad), jnp.float32),
        grid_spec=pltpu.PrefetchScalarGridSpec(
            num_scalar_prefetch=0,
            grid=grid,
            in_specs=[
                # adjacency tile, streamed once per layer, double-buffered
                pl.BlockSpec((blk, blk), lambda l, i, k: (i, k)),
                # layer-0 embedding, streamed as row tiles (see emb_index_map)
                pl.BlockSpec((blk, d_pad), emb_index_map),
                # W_l^T: one (d_pad, d_pad) slab per layer
                pl.BlockSpec((1, d_pad, d_pad), lambda l, i, k: (l, 0, 0)),
            ],
            # constant block index -> output stays VMEM-resident as the mean
            # accumulator and is written back to HBM exactly once at the end.
            out_specs=pl.BlockSpec((n_pad, d_pad), lambda l, i, k: (0, 0)),
            scratch_shapes=[
                pltpu.VMEM((n_pad, d_pad), jnp.float32),   # X  (layer input)
                pltpu.VMEM((n_pad, d_pad), jnp.float32),   # H = X @ W_l^T
                pltpu.VMEM((blk, d_pad), jnp.float32),     # row-tile accumulator
            ],
        ),
        compiler_params=pltpu.CompilerParams(
            # Every axis carries loop state in shared VMEM scratch (X / H /
            # output accumulator), so none may be sharded across TensorCores.
            dimension_semantics=("arbitrary", "arbitrary", "arbitrary"),
            vmem_limit_bytes=48 * 1024 * 1024,
        ),
        cost_estimate=cost,
    )(a, x0, wt)

    return out[:n, :d]


def _reference(adjacency, embedding, weights):
    # plain-JAX reference mirroring the PyTorch module
    x = embedding.astype(jnp.float32)
    final = [x]
    for w in weights:
        x = adjacency @ (x @ w.T)
        norm = jnp.sqrt(jnp.sum(x * x, axis=-1, keepdims=True))
        final.append(x / jnp.maximum(norm, 1e-12))
    return jnp.mean(jnp.stack(final, axis=0), axis=0)


if __name__ == "__main__":
    key = jax.random.PRNGKey(0)
    n_items = 200     # deliberately NOT a multiple of 128 -> exercises padding
    emb_size = 32     # padded to 128 lanes inside the wrapper
    n_layers = 3      # ItemConv(layers=3, emb_size=32)

    k_adj, k_emb, *k_w = jax.random.split(key, 2 + n_layers)

    # deterministic row-normalized "sparse-like" adjacency, densified
    raw = jax.random.uniform(k_adj, (n_items, n_items), dtype=jnp.float32)
    mask = (raw > 0.7).astype(jnp.float32) + jnp.eye(n_items, dtype=jnp.float32)
    adjacency = mask / jnp.sum(mask, axis=-1, keepdims=True)

    embedding = jax.random.normal(k_emb, (n_items, emb_size), dtype=jnp.float32)

    # nn.Linear(emb, emb, bias=False) weights
    bound = 1.0 / math.sqrt(emb_size)
    weights = [
        jax.random.uniform(k_w[i], (emb_size, emb_size),
                           minval=-bound, maxval=bound, dtype=jnp.float32)
        for i in range(n_layers)
    ]

    # small tile so the toy problem still exercises the full (layers, rows, k)
    # grid, padding, and the just-in-time H production path
    out = item_conv_forward(adjacency, embedding, weights, block_size=128)
    out = jax.block_until_ready(out)

    ref = _reference(adjacency, embedding, weights)
    assert out.shape == (n_items, emb_size)
    err = float(jnp.max(jnp.abs(out - ref)))
    assert jnp.allclose(out, ref, atol=1e-4, rtol=1e-4), f"max abs err {err}"

    print("KERNEL_OK")
</pallas_src>

<mosaic_0001>
module attributes {stable_mosaic.version = 11 : i64} {
  func.func @_itemconv_kernel(%arg0: i32, %arg1: i32, %arg2: i32, %arg3: memref<128x128xf32, #tpu.memory_space<vmem>>, %arg4: memref<128x128xf32, #tpu.memory_space<vmem>>, %arg5: memref<1x128x128xf32, #tpu.memory_space<vmem>>, %arg6: memref<256x128xf32, #tpu.memory_space<vmem>>, %arg7: memref<256x128xf32, #tpu.memory_space<vmem>>, %arg8: memref<256x128xf32, #tpu.memory_space<vmem>>, %arg9: memref<128x128xf32, #tpu.memory_space<vmem>>) attributes {dimension_semantics = [#tpu.dimension_semantics<arbitrary>, #tpu.dimension_semantics<arbitrary>, #tpu.dimension_semantics<arbitrary>], iteration_bounds = array<i64: 3, 2, 2>, scalar_prefetch = 0 : i64, scratch_operands = 3 : i64, tpu.core_type = #tpu.core_type<tc>, window_params = [{transform_indices = @transform_0, window_bounds = array<i64: 128, 128>}, {transform_indices = @transform_1, window_bounds = array<i64: 128, 128>}, {transform_indices = @transform_2, window_bounds = array<i64: 1, 128, 128>}, {pipeline_mode = #tpu.pipeline_mode<synchronous>, transform_indices = @transform_3, window_bounds = array<i64: 256, 128>}]} {
    %c128_i32 = arith.constant 128 : i32
    %0 = arith.muli %arg1, %c128_i32 : i32
    %1 = tpu.assume_multiple %0, 128 : i32
    %c128_i32_0 = arith.constant 128 : i32
    %2 = arith.muli %arg2, %c128_i32_0 : i32
    %3 = tpu.assume_multiple %2, 128 : i32
    %c0_i32 = arith.constant 0 : i32
    %4 = arith.cmpi eq, %arg0, %c0_i32 : i32
    %5 = arith.cmpi eq, %arg2, %arg1 : i32
    %6 = arith.andi %4, %5 : i1
    %7 = arith.extui %6 : i1 to i32
    %c0_i32_1 = arith.constant 0 : i32
    %8 = arith.cmpi ne, %7, %c0_i32_1 : i32
    scf.if %8 {
      %c0_13 = arith.constant 0 : index
      %c0_14 = arith.constant 0 : index
      %25 = vector.load %arg4[%c0_13, %c0_14] : memref<128x128xf32, #tpu.memory_space<vmem>>, vector<128x128xf32>
      %cst_15 = arith.constant 2.500000e-01 : f32
      %26 = vector.broadcast %cst_15 : f32 to vector<128x128xf32>
      %27 = arith.mulf %25, %26 : vector<128x128xf32>
      %28 = arith.index_cast %1 : i32 to index
      %c0_16 = arith.constant 0 : index
      %29 = vector.load %arg6[%28, %c0_16] : memref<256x128xf32, #tpu.memory_space<vmem>>, vector<128x128xf32>
      tpu.vector_store %arg6[%28, %c0_16], %27 {strides = array<i32>} : memref<256x128xf32, #tpu.memory_space<vmem>>, vector<128x128xf32>,
    } else {
    }
    %c0_i32_2 = arith.constant 0 : i32
    %9 = arith.cmpi eq, %arg1, %c0_i32_2 : i32
    %10 = arith.extui %9 : i1 to i32
    %c0_i32_3 = arith.constant 0 : i32
    %11 = arith.cmpi ne, %10, %c0_i32_3 : i32
    scf.if %11 {
      %c0_13 = arith.constant 0 : index
      %c0_14 = arith.constant 0 : index
      %c0_15 = arith.constant 0 : index
      %25 = vector.load %arg5[%c0_13, %c0_14, %c0_15] : memref<1x128x128xf32, #tpu.memory_space<vmem>>, vector<1x128x128xf32>
      %26 = vector.shape_cast %25 : vector<1x128x128xf32> to vector<128x128xf32>
      %c0_i32_16 = arith.constant 0 : i32
      %27 = arith.cmpi eq, %arg0, %c0_i32_16 : i32
      %28 = arith.extui %27 : i1 to i32
      %c0_i32_17 = arith.constant 0 : i32
      %29 = arith.cmpi ne, %28, %c0_i32_17 : i32
      scf.if %29 {
        %c0_20 = arith.constant 0 : index
        %c0_21 = arith.constant 0 : index
        %33 = vector.load %arg4[%c0_20, %c0_21] : memref<128x128xf32, #tpu.memory_space<vmem>>, vector<128x128xf32>
        %cst_22 = arith.constant dense<0.000000e+00> : vector<128x128xf32>
        %34 = tpu.matmul %33, %26, %cst_22 {dimension_numbers = #tpu.dot_dimension_numbers<[1], [0], [0], [1], [0, 0, 1, 1], [], []>} : vector<128x128xf32>, vector<128x128xf32>, vector<128x128xf32> -> vector<128x128xf32>
        %35 = arith.index_cast %3 : i32 to index
        %c0_23 = arith.constant 0 : index
        %36 = vector.load %arg8[%35, %c0_23] : memref<256x128xf32, #tpu.memory_space<vmem>>, vector<128x128xf32>
        tpu.vector_store %arg8[%35, %c0_23], %34 {strides = array<i32>} : memref<256x128xf32, #tpu.memory_space<vmem>>, vector<128x128xf32>,
      } else {
      }
      %c0_i32_18 = arith.constant 0 : i32
      %30 = arith.cmpi sgt, %arg0, %c0_i32_18 : i32
      %31 = arith.extui %30 : i1 to i32
      %c0_i32_19 = arith.constant 0 : i32
      %32 = arith.cmpi ne, %31, %c0_i32_19 : i32
      scf.if %32 {
        %33 = arith.index_cast %3 : i32 to index
        %c0_20 = arith.constant 0 : index
        %34 = vector.load %arg7[%33, %c0_20] : memref<256x128xf32, #tpu.memory_space<vmem>>, vector<128x128xf32>
        %cst_21 = arith.constant dense<0.000000e+00> : vector<128x128xf32>
        %35 = tpu.matmul %34, %26, %cst_21 {dimension_numbers = #tpu.dot_dimension_numbers<[1], [0], [0], [1], [0, 0, 1, 1], [], []>} : vector<128x128xf32>, vector<128x128xf32>, vector<128x128xf32> -> vector<128x128xf32>
        %36 = arith.index_cast %3 : i32 to index
        %c0_22 = arith.constant 0 : index
        %37 = vector.load %arg8[%36, %c0_22] : memref<256x128xf32, #tpu.memory_space<vmem>>, vector<128x128xf32>
        tpu.vector_store %arg8[%36, %c0_22], %35 {strides = array<i32>} : memref<256x128xf32, #tpu.memory_space<vmem>>, vector<128x128xf32>,
      } else {
      }
    } else {
    }
    %c0_i32_4 = arith.constant 0 : i32
    %12 = arith.cmpi eq, %arg2, %c0_i32_4 : i32
    %13 = arith.extui %12 : i1 to i32
    %c0_i32_5 = arith.constant 0 : i32
    %14 = arith.cmpi ne, %13, %c0_i32_5 : i32
    scf.if %14 {
      %cst_13 = arith.constant 0.000000e+00 : f32
      %25 = vector.broadcast %cst_13 : f32 to vector<128x128xf32>
      %c0_14 = arith.constant 0 : index
      %c0_15 = arith.constant 0 : index
      %26 = vector.load %arg9[%c0_14, %c0_15] : memref<128x128xf32, #tpu.memory_space<vmem>>, vector<128x128xf32>
      tpu.vector_store %arg9[%c0_14, %c0_15], %25 {strides = array<i32>} : memref<128x128xf32, #tpu.memory_space<vmem>>, vector<128x128xf32>,
    } else {
    }
    %c0 = arith.constant 0 : index
    %c0_6 = arith.constant 0 : index
    %15 = vector.load %arg9[%c0, %c0_6] : memref<128x128xf32, #tpu.memory_space<vmem>>, vector<128x128xf32>
    %c0_7 = arith.constant 0 : index
    %c0_8 = arith.constant 0 : index
    %16 = vector.load %arg3[%c0_7, %c0_8] : memref<128x128xf32, #tpu.memory_space<vmem>>, vector<128x128xf32>
    %17 = arith.index_cast %3 : i32 to index
    %c0_9 = arith.constant 0 : index
    %18 = vector.load %arg8[%17, %c0_9] : memref<256x128xf32, #tpu.memory_space<vmem>>, vector<128x128xf32>
    %cst = arith.constant dense<0.000000e+00> : vector<128x128xf32>
    %19 = tpu.matmul %16, %18, %cst {dimension_numbers = #tpu.dot_dimension_numbers<[1], [0], [0], [1], [0, 0, 1, 1], [], []>} : vector<128x128xf32>, vector<128x128xf32>, vector<128x128xf32> -> vector<128x128xf32>
    %20 = arith.addf %15, %19 : vector<128x128xf32>
    %c0_10 = arith.constant 0 : index
    %c0_11 = arith.constant 0 : index
    %21 = vector.load %arg9[%c0_10, %c0_11] : memref<128x128xf32, #tpu.memory_space<vmem>>, vector<128x128xf32>
    tpu.vector_store %arg9[%c0_10, %c0_11], %20 {strides = array<i32>} : memref<128x128xf32, #tpu.memory_space<vmem>>, vector<128x128xf32>,
    %c1_i32 = arith.constant 1 : i32
    %22 = arith.cmpi eq, %arg2, %c1_i32 : i32
    %23 = arith.extui %22 : i1 to i32
    %c0_i32_12 = arith.constant 0 : i32
    %24 = arith.cmpi ne, %23, %c0_i32_12 : i32
    scf.if %24 {
      %c0_13 = arith.constant 0 : index
      %c0_14 = arith.constant 0 : index
      %25 = vector.load %arg9[%c0_13, %c0_14] : memref<128x128xf32, #tpu.memory_space<vmem>>, vector<128x128xf32>
      %c2_i32 = arith.constant 2 : i32
      %26 = arith.cmpi slt, %arg0, %c2_i32 : i32
      %27 = arith.extui %26 : i1 to i32
      %c0_i32_15 = arith.constant 0 : i32
      %28 = arith.cmpi ne, %27, %c0_i32_15 : i32
      scf.if %28 {
        %44 = arith.index_cast %1 : i32 to index
        %c0_21 = arith.constant 0 : index
        %45 = vector.load %arg7[%44, %c0_21] : memref<256x128xf32, #tpu.memory_space<vmem>>, vector<128x128xf32>
        tpu.vector_store %arg7[%44, %c0_21], %25 {strides = array<i32>} : memref<256x128xf32, #tpu.memory_space<vmem>>, vector<128x128xf32>,
      } else {
      }
      %29 = arith.mulf %25, %25 : vector<128x128xf32>
      %cst_16 = arith.constant dense<0.000000e+00> : vector<128xf32>
      %30 = vector.multi_reduction <add>, %29, %cst_16 [1] : vector<128x128xf32> to vector<128xf32>
      %31 = vector.shape_cast %30 : vector<128xf32> to vector<128x1xf32>
      %cst_17 = arith.constant 1.000000e-24 : f32
      %32 = vector.broadcast %cst_17 : f32 to vector<128x1xf32>
      %33 = arith.maximumf %31, %32 : vector<128x1xf32>
      %34 = math.rsqrt %33 : vector<128x1xf32>
      %cst_18 = arith.constant 2.500000e-01 : f32
      %35 = vector.broadcast %cst_18 : f32 to vector<128x1xf32>
      %36 = arith.mulf %34, %35 : vector<128x1xf32>
      %37 = arith.index_cast %1 : i32 to index
      %c0_19 = arith.constant 0 : index
      %38 = vector.load %arg6[%37, %c0_19] : memref<256x128xf32, #tpu.memory_space<vmem>>, vector<128x128xf32>
      %39 = vector.broadcast %36 : vector<128x1xf32> to vector<128x128xf32>
      %40 = arith.mulf %25, %39 : vector<128x128xf32>
      %41 = arith.addf %38, %40 : vector<128x128xf32>
      %42 = arith.index_cast %1 : i32 to index
      %c0_20 = arith.constant 0 : index
      %43 = vector.load %arg6[%42, %c0_20] : memref<256x128xf32, #tpu.memory_space<vmem>>, vector<128x128xf32>
      tpu.vector_store %arg6[%42, %c0_20], %41 {strides = array<i32>} : memref<256x128xf32, #tpu.memory_space<vmem>>, vector<128x128xf32>,
    } else {
    }
    return
  }
  func.func @transform_0(%arg0: i32, %arg1: i32, %arg2: i32) -> (i32, i32) {
    %c0_i32 = arith.constant 0 : i32
    return %arg1, %arg2 : i32, i32
  }
  func.func @transform_1(%arg0: i32, %arg1: i32, %arg2: i32) -> (i32, i32) {
    %c0_i32 = arith.constant 0 : i32
    %0 = arith.cmpi eq, %arg0, %c0_i32 : i32
    %c0_i32_0 = arith.constant 0 : i32
    %1 = arith.cmpi eq, %arg1, %c0_i32_0 : i32
    %2 = arith.select %1, %arg2, %arg1 : i32
    %c0_i32_1 = arith.constant 0 : i32
    %3 = arith.select %0, %2, %c0_i32_1 : i32
    %c0_i32_2 = arith.constant 0 : i32
    %c0_i32_3 = arith.constant 0 : i32
    return %3, %c0_i32_2 : i32, i32
  }
  func.func @transform_2(%arg0: i32, %arg1: i32, %arg2: i32) -> (i32, i32, i32) {
    %c0_i32 = arith.constant 0 : i32
    %c0_i32_0 = arith.constant 0 : i32
    %c0_i32_1 = arith.constant 0 : i32
    return %arg0, %c0_i32, %c0_i32_0 : i32, i32, i32
  }
  func.func @transform_3(%arg0: i32, %arg1: i32, %arg2: i32) -> (i32, i32) {
    %c0_i32 = arith.constant 0 : i32
    %c0_i32_0 = arith.constant 0 : i32
    %c0_i32_1 = arith.constant 0 : i32
    return %c0_i32, %c0_i32_0 : i32, i32
  }
}

</mosaic_0001>

<llo_original>
// kernel: tpu_custom_call.1
$region0: #{tpu_custom_call.1}
  #allocation0 [shape = 'u32[]', space=smem, size = 0x4, offset = 0x4, fixed_abs, tag = 'smem constant byte address 0x4 - core index']
  #allocation1 [shape = 'u32[144,128]{1,0:T(1,128)}', space=vmem, size = 0x12000, scoped, tag = 'internal scratch']
  #allocation2 [shape = 'f32[256,128]{1,0:T(8,128)}', space=vmem, size = 0x20000, scoped, tag = 'scratch operand']
  #allocation3 [shape = 'f32[256,128]{1,0:T(8,128)}', space=vmem, size = 0x20000, scoped, tag = 'scratch operand']
  #allocation4 [shape = 'f32[128,128]{1,0:T(8,128)}', space=vmem, size = 0x10000, scoped, tag = 'scratch operand']
  %s0 = inlined_call_operand.hbm [shape: f32[256,256], index: 0, kind: input, shape index: {}]
  %s1 = inlined_call_operand.hbm [shape: f32[256,128], index: 1, kind: input, shape index: {}]
  %s2 = inlined_call_operand.hbm [shape: f32[3,128,128], index: 2, kind: input, shape index: {}]
  %s3 = inlined_call_operand.hbm [shape: f32[256,128], index: 3, kind: output, shape index: {}]
  %s4 = sld [smem:[#allocation0]]
  $region85: #{tpu_custom_call.1} parent=0
    _
  %s6 = ssub.s32 1, %s4
  %s7 = scalar_select 0, %s6, %s4
  $region1: #{tpu_custom_call.1} parent=0
    #allocation5 [shape = 'u8[131072]{0}', space=vmem, size = 0x20000, scoped, tag = 'input window, operand 0']
    #allocation6 [shape = 's32[2]{0}', space=sflag, size = 0x8, scoped, tag = 'scoped memory for tpu_custom_call.1']
    #allocation7 [shape = 's32[2]{0}', space=sflag, size = 0x8, scoped, tag = 'scoped memory for tpu_custom_call.1']
    #allocation8 [shape = 'u8[131072]{0}', space=vmem, size = 0x20000, scoped, tag = 'input window, operand 1']
    #allocation9 [shape = 's32[2]{0}', space=sflag, size = 0x8, scoped, tag = 'scoped memory for tpu_custom_call.1']
    #allocation10 [shape = 'u8[131072]{0}', space=vmem, size = 0x20000, scoped, tag = 'input window, operand 2']
    #allocation11 [shape = 'u8[131072]{0}', space=vmem, size = 0x20000, scoped, tag = 'output window, operand 0, single buffered']
    %8 = vsyncpa [#allocation6], 0
    %s9 = scalar_lea.sflag [#allocation6], 1
    %10 = vsyncpa %s9, 0
    %11 = vsyncpa [#allocation9], 0
    %s12 = scalar_lea.sflag [#allocation9], 1
    %13 = vsyncpa %s12, 0
    %14 = vsyncpa [#allocation7], 0
    loop: start=0, step=1, limit=14
    $region2: #{tpu_custom_call.1} parent=1 // loop_pre_header
      _
    $region3: #{tpu_custom_call.1} parent=1 // loop_header
      %s16 = sphi 0, %s20
      %p17 = scmp.ge.s32.totalorder %s16, 14
      %s23 = sphi 0, %s42
      %s24 = sphi 0, %s38
      %s25 = sphi 0, %s34
      %s26 = sphi 0, %s23
      %s27 = sphi 0, %s24
      %s28 = sphi 0, %s25
      %s29 = sphi 0, %s26
      %s30 = sphi 0, %s27
      %s31 = sphi 0, %s28
      %s47 = sphi 0, %s49
      %s50 = sphi 0, %s47
      %s51 = sphi 0, %s50
      %s67 = sphi 0, %s51
      %s81 = sphi 0, %s83
      %s84 = sphi 0, %s81
      %s85 = sphi 0, %s84
      %s101 = sphi 0, %s85
      %s107 = sphi 0, %s109
      %s110 = sphi 0, %s107
      %s111 = sphi 0, %s110
      %s127 = sphi 0, %s111
      %s131 = sphi 0, %s131
      %s133 = sphi 0, %s131
      %s134 = sphi 0, %s133
      %s148 = sphi 0, %s134
    $region4: #{tpu_custom_call.1} parent=1 // loop_header_branch
      %19 = sbr.rel (%p17) target = $region8
    $region5: #{tpu_custom_call.1} parent=1 // loop_body
      %s21 = ssub.s32 %s16, 1
      %s22 = ssub.s32 %s16, 2
      %s32 = sadd.s32 1, %s25
      %p33 = scmp.ge.s32.totalorder %s32, 2
      %s34 = scalar_select %p33, 0, %s32
      %s35 = sadd.s32 1, %s24
      %s36 = scalar_select %p33, %s35, %s24
      %p37 = scmp.ge.s32.totalorder %s36, 2
      %s38 = scalar_select %p37, 0, %s36
      %s39 = sadd.s32 1, %s23
      %s40 = scalar_select %p37, %s39, %s23
      %p41 = scmp.ge.s32.totalorder %s40, 3
      %s42 = scalar_select %p41, 0, %s40
      %s43 = ssub.s32 %s24, %s38
      %s44 = ssub.s32 %s25, %s34
      %s45 = sor.u32 %s43, %s44
      %p46 = scmp.eq.s32.totalorder %s45, 0
      %s48 = sadd.s32 %s47, 1
      %s49 = scalar_select %p46, %s47, %s48
      %p52 = pneg %p46
      %p53 = scmp.eq.s32.totalorder %s16, 11
      %p54 = por %p52, %p53
      %p55 = scmp.ne.s32.totalorder %s47, %s50
      %p56 = scmp.eq.s32.totalorder %s16, 0
      %p57 = por %p55, %p56
      %p58 = scmp.ne.s32.totalorder %s47, %s50
      %p59 = scmp.eq.s32.totalorder %s21, 11
      %p60 = por %p58, %p59
      %p61 = scmp.ne.s32.totalorder %s50, %s51
      %p62 = scmp.eq.s32.totalorder %s21, 0
      %p63 = por %p61, %p62
      %p64 = scmp.ne.s32.totalorder %s50, %s51
      %p65 = scmp.eq.s32.totalorder %s22, 11
      %p66 = por %p64, %p65
      %p68 = scmp.ne.s32.totalorder %s51, %s67
      %p69 = scmp.eq.s32.totalorder %s22, 0
      %p70 = por %p68, %p69
      %p71 = scmp.eq.s32.totalorder %s23, 0
      %p72 = scmp.eq.s32.totalorder %s24, 0
      %s73 = scalar_select %p72, %s25, %s24
      %s74 = scalar_select %p71, %s73, 0
      %p75 = scmp.eq.s32.totalorder %s42, 0
      %p76 = scmp.eq.s32.totalorder %s38, 0
      %s77 = scalar_select %p76, %s34, %s38
      %s78 = scalar_select %p75, %s77, 0
      %s79 = ssub.s32 %s74, %s78
      %p80 = scmp.eq.s32.totalorder %s79, 0
      %s82 = sadd.s32 %s81, 1
      %s83 = scalar_select %p80, %s81, %s82
      %p86 = pneg %p80
      %p87 = scmp.eq.s32.totalorder %s16, 11
      %p88 = por %p86, %p87
      %p89 = scmp.ne.s32.totalorder %s81, %s84
      %p90 = scmp.eq.s32.totalorder %s16, 0
      %p91 = por %p89, %p90
      %p92 = scmp.ne.s32.totalorder %s81, %s84
      %p93 = scmp.eq.s32.totalorder %s21, 11
      %p94 = por %p92, %p93
      %p95 = scmp.ne.s32.totalorder %s84, %s85
      %p96 = scmp.eq.s32.totalorder %s21, 0
      %p97 = por %p95, %p96
      %p98 = scmp.ne.s32.totalorder %s84, %s85
      %p99 = scmp.eq.s32.totalorder %s22, 11
      %p100 = por %p98, %p99
      %p102 = scmp.ne.s32.totalorder %s85, %s101
      %p103 = scmp.eq.s32.totalorder %s22, 0
      %p104 = por %p102, %p103
      %s105 = ssub.s32 %s23, %s42
      %p106 = scmp.eq.s32.totalorder %s105, 0
      %s108 = sadd.s32 %s107, 1
      %s109 = scalar_select %p106, %s107, %s108
      %p112 = pneg %p106
      %p113 = scmp.eq.s32.totalorder %s16, 11
      %p114 = por %p112, %p113
      %p115 = scmp.ne.s32.totalorder %s107, %s110
      %p116 = scmp.eq.s32.totalorder %s16, 0
      %p117 = por %p115, %p116
      %p118 = scmp.ne.s32.totalorder %s107, %s110
      %p119 = scmp.eq.s32.totalorder %s21, 11
      %p120 = por %p118, %p119
      %p121 = scmp.ne.s32.totalorder %s110, %s111
      %p122 = scmp.eq.s32.totalorder %s21, 0
      %p123 = por %p121, %p122
      %p124 = scmp.ne.s32.totalorder %s110, %s111
      %p125 = scmp.eq.s32.totalorder %s22, 11
      %p126 = por %p124, %p125
      %p128 = scmp.ne.s32.totalorder %s111, %s127
      %p129 = scmp.eq.s32.totalorder %s22, 0
      %p130 = por %p128, %p129
      %s132 = sadd.s32 %s131, 1
      %p135 = scmp.eq.s32.totalorder %s16, 11
      %p136 = scmp.ne.s32.totalorder %s131, %s133
      %p137 = scmp.eq.s32.totalorder %s16, 0
      %p138 = por %p136, %p137
      %p139 = scmp.ne.s32.totalorder %s131, %s133
      %p140 = scmp.eq.s32.totalorder %s21, 11
      %p141 = por %p139, %p140
      %p142 = scmp.ne.s32.totalorder %s133, %s134
      %p143 = scmp.eq.s32.totalorder %s21, 0
      %p144 = por %p142, %p143
      %p145 = scmp.ne.s32.totalorder %s133, %s134
      %p146 = scmp.eq.s32.totalorder %s22, 11
      %p147 = por %p145, %p146
      %p149 = scmp.ne.s32.totalorder %s134, %s148
      %p150 = scmp.eq.s32.totalorder %s22, 0
      %p151 = por %p149, %p150
      %p152 = scmp.le.s32.totalorder 1, %s16
      %p153 = scmp.lt.s32.totalorder %s16, 13
      %p154 = pnand %p152, %p153
      %p155 = pneg %p154
      // Predicated region
      $region9: #{tpu_custom_call.1} parent=5 // pred_check
        _
      $region10: #{tpu_custom_call.1} parent=5 // pred_check_branch
        %157 = sbr.rel (%p154) target = $region12
      $region11: #{tpu_custom_call.1} parent=5 // pred_region
        %s158 = ssub.s32 %s16, 1
      $region12: #{tpu_custom_call.1} parent=5 // pred_fallthru
        _
      %p159 = scmp.lt.s32.totalorder %s16, 12
      // Predicated region
      $region13: #{tpu_custom_call.1} parent=5 // pred_check
        %p160 = pneg %p159
      $region14: #{tpu_custom_call.1} parent=5 // pred_check_branch
        %162 = sbr.rel (%p160) target = $region16
      $region15: #{tpu_custom_call.1} parent=5 // pred_region
        // Predicated region
        $region17: #{tpu_custom_call.1} parent=15 // pred_check
          %p163 = pneg %p57
        $region18: #{tpu_custom_call.1} parent=15 // pred_check_branch
          %165 = sbr.rel (%p163) target = $region20
        $region19: #{tpu_custom_call.1} parent=15 // pred_region
          %s166 = sand.u32 %s47, 1
          %s167 = scalar_lea.sflag [#allocation6], %s166
          %s168 = sand.u32 %s47, 1
          %s169 = smul.addr %s168, 128
          %s170 = scalar_lea.vmem [#allocation5], %s169
          %s171 = smul.u32 16, %s24
          %s173 = ssub.s32 2048, 2048
          %174 = vsyncadd %s167, %s173
          %s175 = smul.addr %s171, 2
          %s176 = sadd.s32 %s25, %s175
          %s177 = smul.addr %s176, 128
          %s178 = scalar_lea.hbm %s0, %s177
          %s179 = sshll.u32 %s170, 4
          %s180 = int_to_ptr.vmem [resolvable:$true] %s179
          %185 = dma.hbm_to_vmem [thread:$0]  %s178, 2048, %s180, %s167, 256, 128, 8
        $region20: #{tpu_custom_call.1} parent=15 // pred_fallthru
          _
        // Predicated region
        $region21: #{tpu_custom_call.1} parent=15 // pred_check
          %p186 = pneg %p91
        $region22: #{tpu_custom_call.1} parent=15 // pred_check_branch
          %188 = sbr.rel (%p186) target = $region24
        $region23: #{tpu_custom_call.1} parent=15 // pred_region
          %s189 = sand.u32 %s16, 1
          %s190 = scalar_lea.sflag [#allocation9], %s189
          %s191 = sand.u32 %s81, 1
          %s192 = smul.addr %s191, 128
          %s193 = scalar_lea.vmem [#allocation8], %s192
          %p194 = scmp.eq.s32.totalorder %s23, 0
          %p195 = scmp.eq.s32.totalorder %s24, 0
          %s196 = scalar_select %p195, %s25, %s24
          %s197 = scalar_select %p194, %s196, 0
          %s198 = smul.u32 16, %s197
          %s200 = ssub.s32 2048, 2048
          %201 = vsyncadd %s190, %s200
          %s202 = smul.addr %s198, 128
          %s203 = scalar_lea.hbm %s1, %s202
          %s204 = sshll.u32 %s193, 4
          %s205 = int_to_ptr.vmem [resolvable:$true] %s204
          %210 = dma.hbm_to_vmem [thread:$0]  %s203, 2048, %s205, %s190, 128, 128, 8
        $region24: #{tpu_custom_call.1} parent=15 // pred_fallthru
          _
        // Predicated region
        $region25: #{tpu_custom_call.1} parent=15 // pred_check
          %p211 = pneg %p117
        $region26: #{tpu_custom_call.1} parent=15 // pred_check_branch
          %213 = sbr.rel (%p211) target = $region28
        $region27: #{tpu_custom_call.1} parent=15 // pred_region
          %s214 = sand.u32 %s16, 1
          %s215 = scalar_lea.sflag [#allocation9], %s214
          %s216 = sand.u32 %s107, 1
          %s217 = smul.addr %s216, 128
          %s218 = scalar_lea.vmem [#allocation10], %s217
          %s220 = ssub.s32 2048, 2048
          %221 = vsyncadd %s215, %s220
          %s222 = smul.addr %s23, 16
          %s223 = smul.addr %s222, 128
          %s224 = scalar_lea.hbm %s2, %s223
          %s225 = sshll.u32 %s218, 4
          %s226 = int_to_ptr.vmem [resolvable:$true] %s225
          %231 = dma.hbm_to_vmem [thread:$0]  %s224, 2048, %s226, %s215, 128, 128, 8
        $region28: #{tpu_custom_call.1} parent=15 // pred_fallthru
          _
      $region16: #{tpu_custom_call.1} parent=5 // pred_fallthru
        _
      %p232 = scmp.le.s32.totalorder 1, %s16
      %p233 = scmp.lt.s32.totalorder %s16, 13
      %p234 = pnand %p232, %p233
      %p235 = pneg %p234
      // Predicated region
      $region29: #{tpu_custom_call.1} parent=5 // pred_check
        _
      $region30: #{tpu_custom_call.1} parent=5 // pred_check_branch
        %237 = sbr.rel (%p234) target = $region32
      $region31: #{tpu_custom_call.1} parent=5 // pred_region
        %s238 = ssub.s32 %s16, 1
        %s239 = sand.u32 %s50, 1
        %s240 = scalar_lea.sflag [#allocation6], %s239
        %s241 = sand.u32 %s50, 1
        %s242 = smul.addr %s241, 128
        %s243 = scalar_lea.vmem [#allocation5], %s242
        // Predicated region
        $region33: #{tpu_custom_call.1} parent=31 // pred_check
          %p244 = pneg %p63
        $region34: #{tpu_custom_call.1} parent=31 // pred_check_branch
          %246 = sbr.rel (%p244) target = $region36
        $region35: #{tpu_custom_call.1} parent=31 // pred_region
          %247 = dma.done %s240, 2048
        $region36: #{tpu_custom_call.1} parent=31 // pred_fallthru
          _
        %s248 = sand.u32 %s21, 1
        %s249 = scalar_lea.sflag [#allocation9], %s248
        %s250 = sand.u32 %s84, 1
        %s251 = smul.addr %s250, 128
        %s252 = scalar_lea.vmem [#allocation8], %s251
        // Predicated region
        $region37: #{tpu_custom_call.1} parent=31 // pred_check
          %p253 = pneg %p97
        $region38: #{tpu_custom_call.1} parent=31 // pred_check_branch
          %255 = sbr.rel (%p253) target = $region40
        $region39: #{tpu_custom_call.1} parent=31 // pred_region
          %256 = dma.done %s249, 2048
        $region40: #{tpu_custom_call.1} parent=31 // pred_fallthru
          _
        %s257 = sand.u32 %s21, 1
        %s258 = scalar_lea.sflag [#allocation9], %s257
        %s259 = sand.u32 %s110, 1
        %s260 = smul.addr %s259, 128
        %s261 = scalar_lea.vmem [#allocation10], %s260
        // Predicated region
        $region41: #{tpu_custom_call.1} parent=31 // pred_check
          %p262 = pneg %p123
        $region42: #{tpu_custom_call.1} parent=31 // pred_check_branch
          %264 = sbr.rel (%p262) target = $region44
        $region43: #{tpu_custom_call.1} parent=31 // pred_region
          %265 = dma.done %s258, 2048
        $region44: #{tpu_custom_call.1} parent=31 // pred_fallthru
          _
        %s266 = sand.u32 %s50, 1
        %s267 = scalar_lea.sflag [#allocation6], %s266
        %s268 = sand.u32 %s50, 1
        %s269 = smul.addr %s268, 128
        %s270 = scalar_lea.vmem [#allocation5], %s269
        %p271 = pneg %p63
        %p272 = pneg %p60
        %s273 = sand.u32 %s21, 1
        %s274 = scalar_lea.sflag [#allocation9], %s273
        %s275 = sand.u32 %s84, 1
        %s276 = smul.addr %s275, 128
        %s277 = scalar_lea.vmem [#allocation8], %s276
        %p278 = pneg %p97
        %p279 = pneg %p94
        %s280 = sand.u32 %s21, 1
        %s281 = scalar_lea.sflag [#allocation9], %s280
        %s282 = sand.u32 %s110, 1
        %s283 = smul.addr %s282, 128
        %s284 = scalar_lea.vmem [#allocation10], %s283
        %p285 = pneg %p123
        %p286 = pneg %p120
        %p287 = pneg %p144
        %p288 = pneg %p141
        %s289 = smul.u32 16, %s27
        %p290 = scmp.eq.s32.totalorder %s26, 0
        %p291 = scmp.eq.s32.totalorder %s27, 0
        %s292 = scalar_select %p291, %s28, %s27
        %s293 = scalar_select %p290, %s292, 0
        %s294 = smul.u32 16, %s293
        %s295 = smul.u32 %s27, 128
        %s296 = smul.u32 %s28, 128
        %p297 = scmp.eq.s32.totalorder %s26, 0
        %p298 = scmp.eq.s32.totalorder %s28, %s27
        %p299 = pnand %p297, %p298
        %p300 = pneg %p299
        // Predicated region
        $region45: #{tpu_custom_call.1} parent=31 // pred_check
          _
        $region46: #{tpu_custom_call.1} parent=31 // pred_check_branch
          %302 = sbr.rel (%p299) target = $region48
        $region47: #{tpu_custom_call.1} parent=31 // pred_region
          %v303 = vld [vmem:[%s252] sm:$0xff]
          %v304 = vld [vmem:[%s252 + $0x8] sm:$0xff]
          %v305 = vld [vmem:[%s252 + $0x10] sm:$0xff]
          %v306 = vld [vmem:[%s252 + $0x18] sm:$0xff]
          %v307 = vld [vmem:[%s252 + $0x20] sm:$0xff]
          %v308 = vld [vmem:[%s252 + $0x28] sm:$0xff]
          %v309 = vld [vmem:[%s252 + $0x30] sm:$0xff]
          %v310 = vld [vmem:[%s252 + $0x38] sm:$0xff]
          %v311 = vld [vmem:[%s252 + $0x40] sm:$0xff]
          %v312 = vld [vmem:[%s252 + $0x48] sm:$0xff]
          %v313 = vld [vmem:[%s252 + $0x50] sm:$0xff]
          %v314 = vld [vmem:[%s252 + $0x58] sm:$0xff]
          %v315 = vld [vmem:[%s252 + $0x60] sm:$0xff]
          %v316 = vld [vmem:[%s252 + $0x68] sm:$0xff]
          %v317 = vld [vmem:[%s252 + $0x70] sm:$0xff]
          %v318 = vld [vmem:[%s252 + $0x78] sm:$0xff]
          %v319 = vmul.f32 %v303, 0.25
          %v320 = vmul.f32 %v304, 0.25
          %v321 = vmul.f32 %v305, 0.25
          %v322 = vmul.f32 %v306, 0.25
          %v323 = vmul.f32 %v307, 0.25
          %v324 = vmul.f32 %v308, 0.25
          %v325 = vmul.f32 %v309, 0.25
          %v326 = vmul.f32 %v310, 0.25
          %v327 = vmul.f32 %v311, 0.25
          %v328 = vmul.f32 %v312, 0.25
          %v329 = vmul.f32 %v313, 0.25
          %v330 = vmul.f32 %v314, 0.25
          %v331 = vmul.f32 %v315, 0.25
          %v332 = vmul.f32 %v316, 0.25
          %v333 = vmul.f32 %v317, 0.25
          %v334 = vmul.f32 %v318, 0.25
          %s335 = scalar_lea.vmem [#allocation11], %s295
          %336 = vst [vmem:[%s335] sm:$0xff] %v319
          %337 = vst [vmem:[%s335 + $0x8] sm:$0xff] %v320
          %338 = vst [vmem:[%s335 + $0x10] sm:$0xff] %v321
          %339 = vst [vmem:[%s335 + $0x18] sm:$0xff] %v322
          %340 = vst [vmem:[%s335 + $0x20] sm:$0xff] %v323
          %341 = vst [vmem:[%s335 + $0x28] sm:$0xff] %v324
          %342 = vst [vmem:[%s335 + $0x30] sm:$0xff] %v325
          %343 = vst [vmem:[%s335 + $0x38] sm:$0xff] %v326
          %344 = vst [vmem:[%s335 + $0x40] sm:$0xff] %v327
          %345 = vst [vmem:[%s335 + $0x48] sm:$0xff] %v328
          %346 = vst [vmem:[%s335 + $0x50] sm:$0xff] %v329
          %347 = vst [vmem:[%s335 + $0x58] sm:$0xff] %v330
          %348 = vst [vmem:[%s335 + $0x60] sm:$0xff] %v331
          %349 = vst [vmem:[%s335 + $0x68] sm:$0xff] %v332
          %350 = vst [vmem:[%s335 + $0x70] sm:$0xff] %v333
          %351 = vst [vmem:[%s335 + $0x78] sm:$0xff] %v334
        $region48: #{tpu_custom_call.1} parent=31 // pred_fallthru
          _
        %p352 = scmp.eq.s32.totalorder %s27, 0
        // Predicated region
        $region49: #{tpu_custom_call.1} parent=31 // pred_check
          %p353 = pneg %p352
        $region50: #{tpu_custom_call.1} parent=31 // pred_check_branch
          %355 = sbr.rel (%p353) target = $region52
        $region51: #{tpu_custom_call.1} parent=31 // pred_region
          %v356 = vld [vmem:[%s261] sm:$0xff]
          %v357 = vld [vmem:[%s261 + $0x8] sm:$0xff]
          %v358 = vld [vmem:[%s261 + $0x10] sm:$0xff]
          %v359 = vld [vmem:[%s261 + $0x18] sm:$0xff]
          %v360 = vld [vmem:[%s261 + $0x20] sm:$0xff]
          %v361 = vld [vmem:[%s261 + $0x28] sm:$0xff]
          %v362 = vld [vmem:[%s261 + $0x30] sm:$0xff]
          %v363 = vld [vmem:[%s261 + $0x38] sm:$0xff]
          %v364 = vld [vmem:[%s261 + $0x40] sm:$0xff]
          %v365 = vld [vmem:[%s261 + $0x48] sm:$0xff]
          %v366 = vld [vmem:[%s261 + $0x50] sm:$0xff]
          %v367 = vld [vmem:[%s261 + $0x58] sm:$0xff]
          %v368 = vld [vmem:[%s261 + $0x60] sm:$0xff]
          %v369 = vld [vmem:[%s261 + $0x68] sm:$0xff]
          %v370 = vld [vmem:[%s261 + $0x70] sm:$0xff]
          %v371 = vld [vmem:[%s261 + $0x78] sm:$0xff]
          // Predicated region
          $region53: #{tpu_custom_call.1} parent=51 // pred_check
            %p372 = pneg %p297
          $region54: #{tpu_custom_call.1} parent=51 // pred_check_branch
            %374 = sbr.rel (%p372) target = $region56
          $region55: #{tpu_custom_call.1} parent=51 // pred_region
            %v375 = vld [vmem:[%s252] sm:$0xff]
            %v376 = vld [vmem:[%s252 + $0x8] sm:$0xff]
            %v377 = vld [vmem:[%s252 + $0x10] sm:$0xff]
            %v378 = vld [vmem:[%s252 + $0x18] sm:$0xff]
            %v379 = vld [vmem:[%s252 + $0x20] sm:$0xff]
            %v380 = vld [vmem:[%s252 + $0x28] sm:$0xff]
            %v381 = vld [vmem:[%s252 + $0x30] sm:$0xff]
            %v382 = vld [vmem:[%s252 + $0x38] sm:$0xff]
            %v383 = vld [vmem:[%s252 + $0x40] sm:$0xff]
            %v384 = vld [vmem:[%s252 + $0x48] sm:$0xff]
            %v385 = vld [vmem:[%s252 + $0x50] sm:$0xff]
            %v386 = vld [vmem:[%s252 + $0x58] sm:$0xff]
            %v387 = vld [vmem:[%s252 + $0x60] sm:$0xff]
            %v388 = vld [vmem:[%s252 + $0x68] sm:$0xff]
            %v389 = vld [vmem:[%s252 + $0x70] sm:$0xff]
            %v390 = vld [vmem:[%s252 + $0x78] sm:$0xff]
            %391 = vmatprep.subr.mxu0 0.0
            %392 = vmatpush1.msra.mxu0 %v356
            %393 = vmatprep.subr.mxu0 0.0
            %394 = vmatpush1.msra.mxu0 %v357
            %395 = vmatprep.subr.mxu0 0.0
            %396 = vmatpush1.msra.mxu0 %v358
            %397 = vmatprep.subr.mxu0 0.0
            %398 = vmatpush1.msra.mxu0 %v359
            %399 = vmatprep.subr.mxu0 0.0
            %400 = vmatpush1.msra.mxu0 %v360
            %401 = vmatprep.subr.mxu0 0.0
            %402 = vmatpush1.msra.mxu0 %v361
            %403 = vmatprep.subr.mxu0 0.0
            %404 = vmatpush1.msra.mxu0 %v362
            %405 = vmatprep.subr.mxu0 0.0
            %406 = vmatpush1.msra.mxu0 %v363
            %407 = vmatprep.subr.mxu0 0.0
            %408 = vmatpush1.msra.mxu0 %v364
            %409 = vmatprep.subr.mxu0 0.0
            %410 = vmatpush1.msra.mxu0 %v365
            %411 = vmatprep.subr.mxu0 0.0
            %412 = vmatpush1.msra.mxu0 %v366
            %413 = vmatprep.subr.mxu0 0.0
            %414 = vmatpush1.msra.mxu0 %v367
            %415 = vmatprep.subr.mxu0 0.0
            %416 = vmatpush1.msra.mxu0 %v368
            %417 = vmatprep.subr.mxu0 0.0
            %418 = vmatpush1.msra.mxu0 %v369
            %419 = vmatprep.subr.mxu0 0.0
            %420 = vmatpush1.msra.mxu0 %v370
            %421 = vmatprep.subr.mxu0 0.0
            %422 = vmatpush1.msra.mxu0 %v371
            %423 = vmatprep.subr.mxu0 0.0
            %424 = vmatpush1.msra.mxu0 0.0
            %425 = vmatprep.subr.mxu0 0.0
            %426 = vmatpush1.msra.mxu0 0.0
            %427 = vmatprep.subr.mxu0 0.0
            %428 = vmatpush1.msra.mxu0 0.0
            %429 = vmatprep.subr.mxu0 0.0
            %430 = vmatpush1.msra.mxu0 0.0
            %431 = vmatprep.subr.mxu0 0.0
            %432 = vmatpush1.msra.mxu0 0.0
            %433 = vmatprep.subr.mxu0 0.0
            %434 = vmatpush1.msra.mxu0 0.0
            %435 = vmatprep.subr.mxu0 0.0
            %436 = vmatpush1.msra.mxu0 0.0
            %437 = vmatprep.subr.mxu0 0.0
            %438 = vmatpush1.msra.mxu0 0.0
            %439 = vmatprep.subr.mxu0 0.0
            %440 = vmatpush1.msra.mxu0 0.0
            %441 = vmatprep.subr.mxu0 0.0
            %442 = vmatpush1.msra.mxu0 0.0
            %443 = vmatprep.subr.mxu0 0.0
            %444 = vmatpush1.msra.mxu0 0.0
            %445 = vmatprep.subr.mxu0 0.0
            %446 = vmatpush1.msra.mxu0 0.0
            %447 = vmatprep.subr.mxu0 0.0
            %448 = vmatpush1.msra.mxu0 0.0
            %449 = vmatprep.subr.mxu0 0.0
            %450 = vmatpush1.msra.mxu0 0.0
            %451 = vmatprep.subr.mxu0 0.0
            %452 = vmatpush1.msra.mxu0 0.0
            %453 = vmatprep.subr.mxu0 0.0
            %454 = vmatpush1.msra.mxu0 0.0
            %455 = vmatprep.mubr.f32.mxu0 0.0
            %456 = vmatmul.mubr.f32.gmra.mrb[0].mxu0 %v375
            %v457 = vpop.f32.mrb[0].mxu0
            %v458 = vadd.f32 0.0, %v457
            %v459 = vpop.f32.mrb[0].mxu0
            %460 = vmatprep.mubr.f32.mxu0 0.0
            %461 = vmatmul.mubr.f32.gmra.mrb[0].mxu0 %v376
            %v462 = vpop.f32.mrb[0].mxu0
            %v463 = vadd.f32 0.0, %v462
            %v464 = vpop.f32.mrb[0].mxu0
            %465 = vmatprep.mubr.f32.mxu0 0.0
            %466 = vmatmul.mubr.f32.gmra.mrb[0].mxu0 %v377
            %v467 = vpop.f32.mrb[0].mxu0
            %v468 = vadd.f32 0.0, %v467
            %v469 = vpop.f32.mrb[0].mxu0
            %470 = vmatprep.mubr.f32.mxu0 0.0
            %471 = vmatmul.mubr.f32.gmra.mrb[0].mxu0 %v378
            %v472 = vpop.f32.mrb[0].mxu0
            %v473 = vadd.f32 0.0, %v472
            %v474 = vpop.f32.mrb[0].mxu0
            %475 = vmatprep.mubr.f32.mxu0 0.0
            %476 = vmatmul.mubr.f32.gmra.mrb[0].mxu0 %v379
            %v477 = vpop.f32.mrb[0].mxu0
            %v478 = vadd.f32 0.0, %v477
            %v479 = vpop.f32.mrb[0].mxu0
            %480 = vmatprep.mubr.f32.mxu0 0.0
            %481 = vmatmul.mubr.f32.gmra.mrb[0].mxu0 %v380
            %v482 = vpop.f32.mrb[0].mxu0
            %v483 = vadd.f32 0.0, %v482
            %v484 = vpop.f32.mrb[0].mxu0
            %485 = vmatprep.mubr.f32.mxu0 0.0
            %486 = vmatmul.mubr.f32.gmra.mrb[0].mxu0 %v381
            %v487 = vpop.f32.mrb[0].mxu0
            %v488 = vadd.f32 0.0, %v487
            %v489 = vpop.f32.mrb[0].mxu0
            %490 = vmatprep.mubr.f32.mxu0 0.0
            %491 = vmatmul.mubr.f32.gmra.mrb[0].mxu0 %v382
            %v492 = vpop.f32.mrb[0].mxu0
            %v493 = vadd.f32 0.0, %v492
            %v494 = vpop.f32.mrb[0].mxu0
            %495 = vmatprep.mubr.f32.mxu0 0.0
            %496 = vmatmul.mubr.f32.gmra.mrb[0].mxu0 %v383
            %v497 = vpop.f32.mrb[0].mxu0
            %v498 = vadd.f32 0.0, %v497
            %v499 = vpop.f32.mrb[0].mxu0
            %500 = vmatprep.mubr.f32.mxu0 0.0
            %501 = vmatmul.mubr.f32.gmra.mrb[0].mxu0 %v384
            %v502 = vpop.f32.mrb[0].mxu0
            %v503 = vadd.f32 0.0, %v502
            %v504 = vpop.f32.mrb[0].mxu0
            %505 = vmatprep.mubr.f32.mxu0 0.0
            %506 = vmatmul.mubr.f32.gmra.mrb[0].mxu0 %v385
            %v507 = vpop.f32.mrb[0].mxu0
            %v508 = vadd.f32 0.0, %v507
            %v509 = vpop.f32.mrb[0].mxu0
            %510 = vmatprep.mubr.f32.mxu0 0.0
            %511 = vmatmul.mubr.f32.gmra.mrb[0].mxu0 %v386
            %v512 = vpop.f32.mrb[0].mxu0
            %v513 = vadd.f32 0.0, %v512
            %v514 = vpop.f32.mrb[0].mxu0
            %515 = vmatprep.mubr.f32.mxu0 0.0
            %516 = vmatmul.mubr.f32.gmra.mrb[0].mxu0 %v387
            %v517 = vpop.f32.mrb[0].mxu0
            %v518 = vadd.f32 0.0, %v517
            %v519 = vpop.f32.mrb[0].mxu0
            %520 = vmatprep.mubr.f32.mxu0 0.0
            %521 = vmatmul.mubr.f32.gmra.mrb[0].mxu0 %v388
            %v522 = vpop.f32.mrb[0].mxu0
            %v523 = vadd.f32 0.0, %v522
            %v524 = vpop.f32.mrb[0].mxu0
            %525 = vmatprep.mubr.f32.mxu0 0.0
            %526 = vmatmul.mubr.f32.gmra.mrb[0].mxu0 %v389
            %v527 = vpop.f32.mrb[0].mxu0
            %v528 = vadd.f32 0.0, %v527
            %v529 = vpop.f32.mrb[0].mxu0
            %530 = vmatprep.mubr.f32.mxu0 0.0
            %531 = vmatmul.mubr.f32.gmra.mrb[0].mxu0 %v390
            %v532 = vpop.f32.mrb[0].mxu0
            %v533 = vadd.f32 0.0, %v532
            %v534 = vpop.f32.mrb[0].mxu0
            %535 = vdwg.mxu0
            %s536 = scalar_lea.vmem [#allocation3], %s296
            %537 = vst [vmem:[%s536] sm:$0xff] %v458
            %538 = vst [vmem:[%s536 + $0x8] sm:$0xff] %v463
            %539 = vst [vmem:[%s536 + $0x10] sm:$0xff] %v468
            %540 = vst [vmem:[%s536 + $0x18] sm:$0xff] %v473
            %541 = vst [vmem:[%s536 + $0x20] sm:$0xff] %v478
            %542 = vst [vmem:[%s536 + $0x28] sm:$0xff] %v483
            %543 = vst [vmem:[%s536 + $0x30] sm:$0xff] %v488
            %544 = vst [vmem:[%s536 + $0x38] sm:$0xff] %v493
            %545 = vst [vmem:[%s536 + $0x40] sm:$0xff] %v498
            %546 = vst [vmem:[%s536 + $0x48] sm:$0xff] %v503
            %547 = vst [vmem:[%s536 + $0x50] sm:$0xff] %v508
            %548 = vst [vmem:[%s536 + $0x58] sm:$0xff] %v513
            %549 = vst [vmem:[%s536 + $0x60] sm:$0xff] %v518
            %550 = vst [vmem:[%s536 + $0x68] sm:$0xff] %v523
            %551 = vst [vmem:[%s536 + $0x70] sm:$0xff] %v528
            %552 = vst [vmem:[%s536 + $0x78] sm:$0xff] %v533
          $region56: #{tpu_custom_call.1} parent=51 // pred_fallthru
            _
          %p553 = scmp.gt.s32.totalorder %s26, 0
          // Predicated region
          $region57: #{tpu_custom_call.1} parent=51 // pred_check
            %p554 = pneg %p553
          $region58: #{tpu_custom_call.1} parent=51 // pred_check_branch
            %556 = sbr.rel (%p554) target = $region60
          $region59: #{tpu_custom_call.1} parent=51 // pred_region
            %s557 = scalar_lea.vmem [#allocation2], %s296
            %v558 = vld [vmem:[%s557] sm:$0xff]
            %v559 = vld [vmem:[%s557 + $0x8] sm:$0xff]
            %v560 = vld [vmem:[%s557 + $0x10] sm:$0xff]
            %v561 = vld [vmem:[%s557 + $0x18] sm:$0xff]
            %v562 = vld [vmem:[%s557 + $0x20] sm:$0xff]
            %v563 = vld [vmem:[%s557 + $0x28] sm:$0xff]
            %v564 = vld [vmem:[%s557 + $0x30] sm:$0xff]
            %v565 = vld [vmem:[%s557 + $0x38] sm:$0xff]
            %v566 = vld [vmem:[%s557 + $0x40] sm:$0xff]
            %v567 = vld [vmem:[%s557 + $0x48] sm:$0xff]
            %v568 = vld [vmem:[%s557 + $0x50] sm:$0xff]
            %v569 = vld [vmem:[%s557 + $0x58] sm:$0xff]
            %v570 = vld [vmem:[%s557 + $0x60] sm:$0xff]
            %v571 = vld [vmem:[%s557 + $0x68] sm:$0xff]
            %v572 = vld [vmem:[%s557 + $0x70] sm:$0xff]
            %v573 = vld [vmem:[%s557 + $0x78] sm:$0xff]
            %574 = vmatprep.subr.mxu0 0.0
            %575 = vmatpush1.msra.mxu0 %v356
            %576 = vmatprep.subr.mxu0 0.0
            %577 = vmatpush1.msra.mxu0 %v357
            %578 = vmatprep.subr.mxu0 0.0
            %579 = vmatpush1.msra.mxu0 %v358
            %580 = vmatprep.subr.mxu0 0.0
            %581 = vmatpush1.msra.mxu0 %v359
            %582 = vmatprep.subr.mxu0 0.0
            %583 = vmatpush1.msra.mxu0 %v360
            %584 = vmatprep.subr.mxu0 0.0
            %585 = vmatpush1.msra.mxu0 %v361
            %586 = vmatprep.subr.mxu0 0.0
            %587 = vmatpush1.msra.mxu0 %v362
            %588 = vmatprep.subr.mxu0 0.0
            %589 = vmatpush1.msra.mxu0 %v363
            %590 = vmatprep.subr.mxu0 0.0
            %591 = vmatpush1.msra.mxu0 %v364
            %592 = vmatprep.subr.mxu0 0.0
            %593 = vmatpush1.msra.mxu0 %v365
            %594 = vmatprep.subr.mxu0 0.0
            %595 = vmatpush1.msra.mxu0 %v366
            %596 = vmatprep.subr.mxu0 0.0
            %597 = vmatpush1.msra.mxu0 %v367
            %598 = vmatprep.subr.mxu0 0.0
            %599 = vmatpush1.msra.mxu0 %v368
            %600 = vmatprep.subr.mxu0 0.0
            %601 = vmatpush1.msra.mxu0 %v369
            %602 = vmatprep.subr.mxu0 0.0
            %603 = vmatpush1.msra.mxu0 %v370
            %604 = vmatprep.subr.mxu0 0.0
            %605 = vmatpush1.msra.mxu0 %v371
            %606 = vmatprep.subr.mxu0 0.0
            %607 = vmatpush1.msra.mxu0 0.0
            %608 = vmatprep.subr.mxu0 0.0
            %609 = vmatpush1.msra.mxu0 0.0
            %610 = vmatprep.subr.mxu0 0.0
            %611 = vmatpush1.msra.mxu0 0.0
            %612 = vmatprep.subr.mxu0 0.0
            %613 = vmatpush1.msra.mxu0 0.0
            %614 = vmatprep.subr.mxu0 0.0
            %615 = vmatpush1.msra.mxu0 0.0
            %616 = vmatprep.subr.mxu0 0.0
            %617 = vmatpush1.msra.mxu0 0.0
            %618 = vmatprep.subr.mxu0 0.0
            %619 = vmatpush1.msra.mxu0 0.0
            %620 = vmatprep.subr.mxu0 0.0
            %621 = vmatpush1.msra.mxu0 0.0
            %622 = vmatprep.subr.mxu0 0.0
            %623 = vmatpush1.msra.mxu0 0.0
            %624 = vmatprep.subr.mxu0 0.0
            %625 = vmatpush1.msra.mxu0 0.0
            %626 = vmatprep.subr.mxu0 0.0
            %627 = vmatpush1.msra.mxu0 0.0
            %628 = vmatprep.subr.mxu0 0.0
            %629 = vmatpush1.msra.mxu0 0.0
            %630 = vmatprep.subr.mxu0 0.0
            %631 = vmatpush1.msra.mxu0 0.0
            %632 = vmatprep.subr.mxu0 0.0
            %633 = vmatpush1.msra.mxu0 0.0
            %634 = vmatprep.subr.mxu0 0.0
            %635 = vmatpush1.msra.mxu0 0.0
            %636 = vmatprep.subr.mxu0 0.0
            %637 = vmatpush1.msra.mxu0 0.0
            %638 = vmatprep.mubr.f32.mxu0 0.0
            %639 = vmatmul.mubr.f32.gmra.mrb[0].mxu0 %v558
            %v640 = vpop.f32.mrb[0].mxu0
            %v641 = vadd.f32 0.0, %v640
            %v642 = vpop.f32.mrb[0].mxu0
            %643 = vmatprep.mubr.f32.mxu0 0.0
            %644 = vmatmul.mubr.f32.gmra.mrb[0].mxu0 %v559
            %v645 = vpop.f32.mrb[0].mxu0
            %v646 = vadd.f32 0.0, %v645
            %v647 = vpop.f32.mrb[0].mxu0
            %648 = vmatprep.mubr.f32.mxu0 0.0
            %649 = vmatmul.mubr.f32.gmra.mrb[0].mxu0 %v560
            %v650 = vpop.f32.mrb[0].mxu0
            %v651 = vadd.f32 0.0, %v650
            %v652 = vpop.f32.mrb[0].mxu0
            %653 = vmatprep.mubr.f32.mxu0 0.0
            %654 = vmatmul.mubr.f32.gmra.mrb[0].mxu0 %v561
            %v655 = vpop.f32.mrb[0].mxu0
            %v656 = vadd.f32 0.0, %v655
            %v657 = vpop.f32.mrb[0].mxu0
            %658 = vmatprep.mubr.f32.mxu0 0.0
            %659 = vmatmul.mubr.f32.gmra.mrb[0].mxu0 %v562
            %v660 = vpop.f32.mrb[0].mxu0
            %v661 = vadd.f32 0.0, %v660
            %v662 = vpop.f32.mrb[0].mxu0
            %663 = vmatprep.mubr.f32.mxu0 0.0
            %664 = vmatmul.mubr.f32.gmra.mrb[0].mxu0 %v563
            %v665 = vpop.f32.mrb[0].mxu0
            %v666 = vadd.f32 0.0, %v665
            %v667 = vpop.f32.mrb[0].mxu0
            %668 = vmatprep.mubr.f32.mxu0 0.0
            %669 = vmatmul.mubr.f32.gmra.mrb[0].mxu0 %v564
            %v670 = vpop.f32.mrb[0].mxu0
            %v671 = vadd.f32 0.0, %v670
            %v672 = vpop.f32.mrb[0].mxu0
            %673 = vmatprep.mubr.f32.mxu0 0.0
            %674 = vmatmul.mubr.f32.gmra.mrb[0].mxu0 %v565
            %v675 = vpop.f32.mrb[0].mxu0
            %v676 = vadd.f32 0.0, %v675
            %v677 = vpop.f32.mrb[0].mxu0
            %678 = vmatprep.mubr.f32.mxu0 0.0
            %679 = vmatmul.mubr.f32.gmra.mrb[0].mxu0 %v566
            %v680 = vpop.f32.mrb[0].mxu0
            %v681 = vadd.f32 0.0, %v680
            %v682 = vpop.f32.mrb[0].mxu0
            %683 = vmatprep.mubr.f32.mxu0 0.0
            %684 = vmatmul.mubr.f32.gmra.mrb[0].mxu0 %v567
            %v685 = vpop.f32.mrb[0].mxu0
            %v686 = vadd.f32 0.0, %v685
            %v687 = vpop.f32.mrb[0].mxu0
            %688 = vmatprep.mubr.f32.mxu0 0.0
            %689 = vmatmul.mubr.f32.gmra.mrb[0].mxu0 %v568
            %v690 = vpop.f32.mrb[0].mxu0
            %v691 = vadd.f32 0.0, %v690
            %v692 = vpop.f32.mrb[0].mxu0
            %693 = vmatprep.mubr.f32.mxu0 0.0
            %694 = vmatmul.mubr.f32.gmra.mrb[0].mxu0 %v569
            %v695 = vpop.f32.mrb[0].mxu0
            %v696 = vadd.f32 0.0, %v695
            %v697 = vpop.f32.mrb[0].mxu0
            %698 = vmatprep.mubr.f32.mxu0 0.0
            %699 = vmatmul.mubr.f32.gmra.mrb[0].mxu0 %v570
            %v700 = vpop.f32.mrb[0].mxu0
            %v701 = vadd.f32 0.0, %v700
            %v702 = vpop.f32.mrb[0].mxu0
            %703 = vmatprep.mubr.f32.mxu0 0.0
            %704 = vmatmul.mubr.f32.gmra.mrb[0].mxu0 %v571
            %v705 = vpop.f32.mrb[0].mxu0
            %v706 = vadd.f32 0.0, %v705
            %v707 = vpop.f32.mrb[0].mxu0
            %708 = vmatprep.mubr.f32.mxu0 0.0
            %709 = vmatmul.mubr.f32.gmra.mrb[0].mxu0 %v572
            %v710 = vpop.f32.mrb[0].mxu0
            %v711 = vadd.f32 0.0, %v710
            %v712 = vpop.f32.mrb[0].mxu0
            %713 = vmatprep.mubr.f32.mxu0 0.0
            %714 = vmatmul.mubr.f32.gmra.mrb[0].mxu0 %v573
            %v715 = vpop.f32.mrb[0].mxu0
            %v716 = vadd.f32 0.0, %v715
            %v717 = vpop.f32.mrb[0].mxu0
            %718 = vdwg.mxu0
            %s719 = scalar_lea.vmem [#allocation3], %s296
            %720 = vst [vmem:[%s719] sm:$0xff] %v641
            %721 = vst [vmem:[%s719 + $0x8] sm:$0xff] %v646
            %722 = vst [vmem:[%s719 + $0x10] sm:$0xff] %v651
            %723 = vst [vmem:[%s719 + $0x18] sm:$0xff] %v656
            %724 = vst [vmem:[%s719 + $0x20] sm:$0xff] %v661
            %725 = vst [vmem:[%s719 + $0x28] sm:$0xff] %v666
            %726 = vst [vmem:[%s719 + $0x30] sm:$0xff] %v671
            %727 = vst [vmem:[%s719 + $0x38] sm:$0xff] %v676
            %728 = vst [vmem:[%s719 + $0x40] sm:$0xff] %v681
            %729 = vst [vmem:[%s719 + $0x48] sm:$0xff] %v686
            %730 = vst [vmem:[%s719 + $0x50] sm:$0xff] %v691
            %731 = vst [vmem:[%s719 + $0x58] sm:$0xff] %v696
            %732 = vst [vmem:[%s719 + $0x60] sm:$0xff] %v701
            %733 = vst [vmem:[%s719 + $0x68] sm:$0xff] %v706
            %734 = vst [vmem:[%s719 + $0x70] sm:$0xff] %v711
            %735 = vst [vmem:[%s719 + $0x78] sm:$0xff] %v716
          $region60: #{tpu_custom_call.1} parent=51 // pred_fallthru
            _
        $region52: #{tpu_custom_call.1} parent=31 // pred_fallthru
          _
        %p736 = scmp.eq.s32.totalorder %s28, 0
        // Predicated region
        $region61: #{tpu_custom_call.1} parent=31 // pred_check
          %p737 = pneg %p736
        $region62: #{tpu_custom_call.1} parent=31 // pred_check_branch
          %739 = sbr.rel (%p737) target = $region64
        $region63: #{tpu_custom_call.1} parent=31 // pred_region
          %740 = vst [vmem:[#allocation4] sm:$0xff] 0.0
          %741 = vst [vmem:[#allocation4 + $0x8] sm:$0xff] 0.0
          %742 = vst [vmem:[#allocation4 + $0x10] sm:$0xff] 0.0
          %743 = vst [vmem:[#allocation4 + $0x18] sm:$0xff] 0.0
          %744 = vst [vmem:[#allocation4 + $0x20] sm:$0xff] 0.0
          %745 = vst [vmem:[#allocation4 + $0x28] sm:$0xff] 0.0
          %746 = vst [vmem:[#allocation4 + $0x30] sm:$0xff] 0.0
          %747 = vst [vmem:[#allocation4 + $0x38] sm:$0xff] 0.0
          %748 = vst [vmem:[#allocation4 + $0x40] sm:$0xff] 0.0
          %749 = vst [vmem:[#allocation4 + $0x48] sm:$0xff] 0.0
          %750 = vst [vmem:[#allocation4 + $0x50] sm:$0xff] 0.0
          %751 = vst [vmem:[#allocation4 + $0x58] sm:$0xff] 0.0
          %752 = vst [vmem:[#allocation4 + $0x60] sm:$0xff] 0.0
          %753 = vst [vmem:[#allocation4 + $0x68] sm:$0xff] 0.0
          %754 = vst [vmem:[#allocation4 + $0x70] sm:$0xff] 0.0
          %755 = vst [vmem:[#allocation4 + $0x78] sm:$0xff] 0.0
        $region64: #{tpu_custom_call.1} parent=31 // pred_fallthru
          _
        %v756 = vld [vmem:[#allocation4] sm:$0xff]
        %v757 = vld [vmem:[#allocation4 + $0x8] sm:$0xff]
        %v758 = vld [vmem:[#allocation4 + $0x10] sm:$0xff]
        %v759 = vld [vmem:[#allocation4 + $0x18] sm:$0xff]
        %v760 = vld [vmem:[#allocation4 + $0x20] sm:$0xff]
        %v761 = vld [vmem:[#allocation4 + $0x28] sm:$0xff]
        %v762 = vld [vmem:[#allocation4 + $0x30] sm:$0xff]
        %v763 = vld [vmem:[#allocation4 + $0x38] sm:$0xff]
        %v764 = vld [vmem:[#allocation4 + $0x40] sm:$0xff]
        %v765 = vld [vmem:[#allocation4 + $0x48] sm:$0xff]
        %v766 = vld [vmem:[#allocation4 + $0x50] sm:$0xff]
        %v767 = vld [vmem:[#allocation4 + $0x58] sm:$0xff]
        %v768 = vld [vmem:[#allocation4 + $0x60] sm:$0xff]
        %v769 = vld [vmem:[#allocation4 + $0x68] sm:$0xff]
        %v770 = vld [vmem:[#allocation4 + $0x70] sm:$0xff]
        %v771 = vld [vmem:[#allocation4 + $0x78] sm:$0xff]
        %v772 = vld [vmem:[%s243] sm:$0xff]
        %v773 = vld [vmem:[%s243 + $0x8] sm:$0xff]
        %v774 = vld [vmem:[%s243 + $0x10] sm:$0xff]
        %v775 = vld [vmem:[%s243 + $0x18] sm:$0xff]
        %v776 = vld [vmem:[%s243 + $0x20] sm:$0xff]
        %v777 = vld [vmem:[%s243 + $0x28] sm:$0xff]
        %v778 = vld [vmem:[%s243 + $0x30] sm:$0xff]
        %v779 = vld [vmem:[%s243 + $0x38] sm:$0xff]
        %v780 = vld [vmem:[%s243 + $0x40] sm:$0xff]
        %v781 = vld [vmem:[%s243 + $0x48] sm:$0xff]
        %v782 = vld [vmem:[%s243 + $0x50] sm:$0xff]
        %v783 = vld [vmem:[%s243 + $0x58] sm:$0xff]
        %v784 = vld [vmem:[%s243 + $0x60] sm:$0xff]
        %v785 = vld [vmem:[%s243 + $0x68] sm:$0xff]
        %v786 = vld [vmem:[%s243 + $0x70] sm:$0xff]
        %v787 = vld [vmem:[%s243 + $0x78] sm:$0xff]
        %s788 = scalar_lea.vmem [#allocation3], %s296
        %v789 = vld [vmem:[%s788] sm:$0xff]
        %v790 = vld [vmem:[%s788 + $0x8] sm:$0xff]
        %v791 = vld [vmem:[%s788 + $0x10] sm:$0xff]
        %v792 = vld [vmem:[%s788 + $0x18] sm:$0xff]
        %v793 = vld [vmem:[%s788 + $0x20] sm:$0xff]
        %v794 = vld [vmem:[%s788 + $0x28] sm:$0xff]
        %v795 = vld [vmem:[%s788 + $0x30] sm:$0xff]
        %v796 = vld [vmem:[%s788 + $0x38] sm:$0xff]
        %v797 = vld [vmem:[%s788 + $0x40] sm:$0xff]
        %v798 = vld [vmem:[%s788 + $0x48] sm:$0xff]
        %v799 = vld [vmem:[%s788 + $0x50] sm:$0xff]
        %v800 = vld [vmem:[%s788 + $0x58] sm:$0xff]
        %v801 = vld [vmem:[%s788 + $0x60] sm:$0xff]
        %v802 = vld [vmem:[%s788 + $0x68] sm:$0xff]
        %v803 = vld [vmem:[%s788 + $0x70] sm:$0xff]
        %v804 = vld [vmem:[%s788 + $0x78] sm:$0xff]
        %805 = vmatprep.subr.mxu0 0.0
        %806 = vmatpush1.msra.mxu0 %v789
        %807 = vmatprep.subr.mxu0 0.0
        %808 = vmatpush1.msra.mxu0 %v790
        %809 = vmatprep.subr.mxu0 0.0
        %810 = vmatpush1.msra.mxu0 %v791
        %811 = vmatprep.subr.mxu0 0.0
        %812 = vmatpush1.msra.mxu0 %v792
        %813 = vmatprep.subr.mxu0 0.0
        %814 = vmatpush1.msra.mxu0 %v793
        %815 = vmatprep.subr.mxu0 0.0
        %816 = vmatpush1.msra.mxu0 %v794
        %817 = vmatprep.subr.mxu0 0.0
        %818 = vmatpush1.msra.mxu0 %v795
        %819 = vmatprep.subr.mxu0 0.0
        %820 = vmatpush1.msra.mxu0 %v796
        %821 = vmatprep.subr.mxu0 0.0
        %822 = vmatpush1.msra.mxu0 %v797
        %823 = vmatprep.subr.mxu0 0.0
        %824 = vmatpush1.msra.mxu0 %v798
        %825 = vmatprep.subr.mxu0 0.0
        %826 = vmatpush1.msra.mxu0 %v799
        %827 = vmatprep.subr.mxu0 0.0
        %828 = vmatpush1.msra.mxu0 %v800
        %829 = vmatprep.subr.mxu0 0.0
        %830 = vmatpush1.msra.mxu0 %v801
        %831 = vmatprep.subr.mxu0 0.0
        %832 = vmatpush1.msra.mxu0 %v802
        %833 = vmatprep.subr.mxu0 0.0
        %834 = vmatpush1.msra.mxu0 %v803
        %835 = vmatprep.subr.mxu0 0.0
        %836 = vmatpush1.msra.mxu0 %v804
        %837 = vmatprep.subr.mxu0 0.0
        %838 = vmatpush1.msra.mxu0 0.0
        %839 = vmatprep.subr.mxu0 0.0
        %840 = vmatpush1.msra.mxu0 0.0
        %841 = vmatprep.subr.mxu0 0.0
        %842 = vmatpush1.msra.mxu0 0.0
        %843 = vmatprep.subr.mxu0 0.0
        %844 = vmatpush1.msra.mxu0 0.0
        %845 = vmatprep.subr.mxu0 0.0
        %846 = vmatpush1.msra.mxu0 0.0
        %847 = vmatprep.subr.mxu0 0.0
        %848 = vmatpush1.msra.mxu0 0.0
        %849 = vmatprep.subr.mxu0 0.0
        %850 = vmatpush1.msra.mxu0 0.0
        %851 = vmatprep.subr.mxu0 0.0
        %852 = vmatpush1.msra.mxu0 0.0
        %853 = vmatprep.subr.mxu0 0.0
        %854 = vmatpush1.msra.mxu0 0.0
        %855 = vmatprep.subr.mxu0 0.0
        %856 = vmatpush1.msra.mxu0 0.0
        %857 = vmatprep.subr.mxu0 0.0
        %858 = vmatpush1.msra.mxu0 0.0
        %859 = vmatprep.subr.mxu0 0.0
        %860 = vmatpush1.msra.mxu0 0.0
        %861 = vmatprep.subr.mxu0 0.0
        %862 = vmatpush1.msra.mxu0 0.0
        %863 = vmatprep.subr.mxu0 0.0
        %864 = vmatpush1.msra.mxu0 0.0
        %865 = vmatprep.subr.mxu0 0.0
        %866 = vmatpush1.msra.mxu0 0.0
        %867 = vmatprep.subr.mxu0 0.0
        %868 = vmatpush1.msra.mxu0 0.0
        %869 = vmatprep.mubr.f32.mxu0 0.0
        %870 = vmatmul.mubr.f32.gmra.mrb[0].mxu0 %v772
        %v871 = vpop.f32.mrb[0].mxu0
        %v872 = vadd.f32 0.0, %v871
        %v873 = vpop.f32.mrb[0].mxu0
        %874 = vmatprep.mubr.f32.mxu0 0.0
        %875 = vmatmul.mubr.f32.gmra.mrb[0].mxu0 %v773
        %v876 = vpop.f32.mrb[0].mxu0
        %v877 = vadd.f32 0.0, %v876
        %v878 = vpop.f32.mrb[0].mxu0
        %879 = vmatprep.mubr.f32.mxu0 0.0
        %880 = vmatmul.mubr.f32.gmra.mrb[0].mxu0 %v774
        %v881 = vpop.f32.mrb[0].mxu0
        %v882 = vadd.f32 0.0, %v881
        %v883 = vpop.f32.mrb[0].mxu0
        %884 = vmatprep.mubr.f32.mxu0 0.0
        %885 = vmatmul.mubr.f32.gmra.mrb[0].mxu0 %v775
        %v886 = vpop.f32.mrb[0].mxu0
        %v887 = vadd.f32 0.0, %v886
        %v888 = vpop.f32.mrb[0].mxu0
        %889 = vmatprep.mubr.f32.mxu0 0.0
        %890 = vmatmul.mubr.f32.gmra.mrb[0].mxu0 %v776
        %v891 = vpop.f32.mrb[0].mxu0
        %v892 = vadd.f32 0.0, %v891
        %v893 = vpop.f32.mrb[0].mxu0
        %894 = vmatprep.mubr.f32.mxu0 0.0
        %895 = vmatmul.mubr.f32.gmra.mrb[0].mxu0 %v777
        %v896 = vpop.f32.mrb[0].mxu0
        %v897 = vadd.f32 0.0, %v896
        %v898 = vpop.f32.mrb[0].mxu0
        %899 = vmatprep.mubr.f32.mxu0 0.0
        %900 = vmatmul.mubr.f32.gmra.mrb[0].mxu0 %v778
        %v901 = vpop.f32.mrb[0].mxu0
        %v902 = vadd.f32 0.0, %v901
        %v903 = vpop.f32.mrb[0].mxu0
        %904 = vmatprep.mubr.f32.mxu0 0.0
        %905 = vmatmul.mubr.f32.gmra.mrb[0].mxu0 %v779
        %v906 = vpop.f32.mrb[0].mxu0
        %v907 = vadd.f32 0.0, %v906
        %v908 = vpop.f32.mrb[0].mxu0
        %909 = vmatprep.mubr.f32.mxu0 0.0
        %910 = vmatmul.mubr.f32.gmra.mrb[0].mxu0 %v780
        %v911 = vpop.f32.mrb[0].mxu0
        %v912 = vadd.f32 0.0, %v911
        %v913 = vpop.f32.mrb[0].mxu0
        %914 = vmatprep.mubr.f32.mxu0 0.0
        %915 = vmatmul.mubr.f32.gmra.mrb[0].mxu0 %v781
        %v916 = vpop.f32.mrb[0].mxu0
        %v917 = vadd.f32 0.0, %v916
        %v918 = vpop.f32.mrb[0].mxu0
        %919 = vmatprep.mubr.f32.mxu0 0.0
        %920 = vmatmul.mubr.f32.gmra.mrb[0].mxu0 %v782
        %v921 = vpop.f32.mrb[0].mxu0
        %v922 = vadd.f32 0.0, %v921
        %v923 = vpop.f32.mrb[0].mxu0
        %924 = vmatprep.mubr.f32.mxu0 0.0
        %925 = vmatmul.mubr.f32.gmra.mrb[0].mxu0 %v783
        %v926 = vpop.f32.mrb[0].mxu0
        %v927 = vadd.f32 0.0, %v926
        %v928 = vpop.f32.mrb[0].mxu0
        %929 = vmatprep.mubr.f32.mxu0 0.0
        %930 = vmatmul.mubr.f32.gmra.mrb[0].mxu0 %v784
        %v931 = vpop.f32.mrb[0].mxu0
        %v932 = vadd.f32 0.0, %v931
        %v933 = vpop.f32.mrb[0].mxu0
        %934 = vmatprep.mubr.f32.mxu0 0.0
        %935 = vmatmul.mubr.f32.gmra.mrb[0].mxu0 %v785
        %v936 = vpop.f32.mrb[0].mxu0
        %v937 = vadd.f32 0.0, %v936
        %v938 = vpop.f32.mrb[0].mxu0
        %939 = vmatprep.mubr.f32.mxu0 0.0
        %940 = vmatmul.mubr.f32.gmra.mrb[0].mxu0 %v786
        %v941 = vpop.f32.mrb[0].mxu0
        %v942 = vadd.f32 0.0, %v941
        %v943 = vpop.f32.mrb[0].mxu0
        %944 = vmatprep.mubr.f32.mxu0 0.0
        %945 = vmatmul.mubr.f32.gmra.mrb[0].mxu0 %v787
        %v946 = vpop.f32.mrb[0].mxu0
        %v947 = vadd.f32 0.0, %v946
        %v948 = vpop.f32.mrb[0].mxu0
        %949 = vdwg.mxu0
        %v950 = vadd.f32 %v756, %v872
        %v951 = vadd.f32 %v757, %v877
        %v952 = vadd.f32 %v758, %v882
        %v953 = vadd.f32 %v759, %v887
        %v954 = vadd.f32 %v760, %v892
        %v955 = vadd.f32 %v761, %v897
        %v956 = vadd.f32 %v762, %v902
        %v957 = vadd.f32 %v763, %v907
        %v958 = vadd.f32 %v764, %v912
        %v959 = vadd.f32 %v765, %v917
        %v960 = vadd.f32 %v766, %v922
        %v961 = vadd.f32 %v767, %v927
        %v962 = vadd.f32 %v768, %v932
        %v963 = vadd.f32 %v769, %v937
        %v964 = vadd.f32 %v770, %v942
        %v965 = vadd.f32 %v771, %v947
        %966 = vst [vmem:[#allocation4] sm:$0xff] %v950
        %967 = vst [vmem:[#allocation4 + $0x8] sm:$0xff] %v951
        %968 = vst [vmem:[#allocation4 + $0x10] sm:$0xff] %v952
        %969 = vst [vmem:[#allocation4 + $0x18] sm:$0xff] %v953
        %970 = vst [vmem:[#allocation4 + $0x20] sm:$0xff] %v954
        %971 = vst [vmem:[#allocation4 + $0x28] sm:$0xff] %v955
        %972 = vst [vmem:[#allocation4 + $0x30] sm:$0xff] %v956
        %973 = vst [vmem:[#allocation4 + $0x38] sm:$0xff] %v957
        %974 = vst [vmem:[#allocation4 + $0x40] sm:$0xff] %v958
        %975 = vst [vmem:[#allocation4 + $0x48] sm:$0xff] %v959
        %976 = vst [vmem:[#allocation4 + $0x50] sm:$0xff] %v960
        %977 = vst [vmem:[#allocation4 + $0x58] sm:$0xff] %v961
        %978 = vst [vmem:[#allocation4 + $0x60] sm:$0xff] %v962
        %979 = vst [vmem:[#allocation4 + $0x68] sm:$0xff] %v963
        %980 = vst [vmem:[#allocation4 + $0x70] sm:$0xff] %v964
        %981 = vst [vmem:[#allocation4 + $0x78] sm:$0xff] %v965
        %p982 = scmp.eq.s32.totalorder %s28, 1
        // Predicated region
        $region65: #{tpu_custom_call.1} parent=31 // pred_check
          %p983 = pneg %p982
        $region66: #{tpu_custom_call.1} parent=31 // pred_check_branch
          %985 = sbr.rel (%p983) target = $region68
        $region67: #{tpu_custom_call.1} parent=31 // pred_region
          %v986 = vld [vmem:[#allocation4] sm:$0xff]
          %v987 = vld [vmem:[#allocation4 + $0x8] sm:$0xff]
          %v988 = vld [vmem:[#allocation4 + $0x10] sm:$0xff]
          %v989 = vld [vmem:[#allocation4 + $0x18] sm:$0xff]
          %v990 = vld [vmem:[#allocation4 + $0x20] sm:$0xff]
          %v991 = vld [vmem:[#allocation4 + $0x28] sm:$0xff]
          %v992 = vld [vmem:[#allocation4 + $0x30] sm:$0xff]
          %v993 = vld [vmem:[#allocation4 + $0x38] sm:$0xff]
          %v994 = vld [vmem:[#allocation4 + $0x40] sm:$0xff]
          %v995 = vld [vmem:[#allocation4 + $0x48] sm:$0xff]
          %v996 = vld [vmem:[#allocation4 + $0x50] sm:$0xff]
          %v997 = vld [vmem:[#allocation4 + $0x58] sm:$0xff]
          %v998 = vld [vmem:[#allocation4 + $0x60] sm:$0xff]
          %v999 = vld [vmem:[#allocation4 + $0x68] sm:$0xff]
          %v1000 = vld [vmem:[#allocation4 + $0x70] sm:$0xff]
          %v1001 = vld [vmem:[#allocation4 + $0x78] sm:$0xff]
          %p1002 = scmp.lt.s32.totalorder %s26, 2
          // Predicated region
          $region69: #{tpu_custom_call.1} parent=67 // pred_check
            %p1003 = pneg %p1002
          $region70: #{tpu_custom_call.1} parent=67 // pred_check_branch
            %1005 = sbr.rel (%p1003) target = $region72
          $region71: #{tpu_custom_call.1} parent=67 // pred_region
            %s1006 = scalar_lea.vmem [#allocation2], %s295
            %1007 = vst [vmem:[%s1006] sm:$0xff] %v986
            %1008 = vst [vmem:[%s1006 + $0x8] sm:$0xff] %v987
            %1009 = vst [vmem:[%s1006 + $0x10] sm:$0xff] %v988
            %1010 = vst [vmem:[%s1006 + $0x18] sm:$0xff] %v989
            %1011 = vst [vmem:[%s1006 + $0x20] sm:$0xff] %v990
            %1012 = vst [vmem:[%s1006 + $0x28] sm:$0xff] %v991
            %1013 = vst [vmem:[%s1006 + $0x30] sm:$0xff] %v992
            %1014 = vst [vmem:[%s1006 + $0x38] sm:$0xff] %v993
            %1015 = vst [vmem:[%s1006 + $0x40] sm:$0xff] %v994
            %1016 = vst [vmem:[%s1006 + $0x48] sm:$0xff] %v995
            %1017 = vst [vmem:[%s1006 + $0x50] sm:$0xff] %v996
            %1018 = vst [vmem:[%s1006 + $0x58] sm:$0xff] %v997
            %1019 = vst [vmem:[%s1006 + $0x60] sm:$0xff] %v998
            %1020 = vst [vmem:[%s1006 + $0x68] sm:$0xff] %v999
            %1021 = vst [vmem:[%s1006 + $0x70] sm:$0xff] %v1000
            %1022 = vst [vmem:[%s1006 + $0x78] sm:$0xff] %v1001
          $region72: #{tpu_custom_call.1} parent=67 // pred_fallthru
            _
          %v1023 = vmul.f32 %v986, %v986
          %v1024 = vmul.f32 %v987, %v987
          %v1025 = vmul.f32 %v988, %v988
          %v1026 = vmul.f32 %v989, %v989
          %v1027 = vmul.f32 %v990, %v990
          %v1028 = vmul.f32 %v991, %v991
          %v1029 = vmul.f32 %v992, %v992
          %v1030 = vmul.f32 %v993, %v993
          %v1031 = vmul.f32 %v994, %v994
          %v1032 = vmul.f32 %v995, %v995
          %v1033 = vmul.f32 %v996, %v996
          %v1034 = vmul.f32 %v997, %v997
          %v1035 = vmul.f32 %v998, %v998
          %v1036 = vmul.f32 %v999, %v999
          %v1037 = vmul.f32 %v1000, %v1000
          %v1038 = vmul.f32 %v1001, %v1001
          %1039 = vadd.xlane.f32.xlu0 %v1023
          %v1040 = vpop.xlane.xlu0 %1039
          %1041 = vadd.xlane.f32.xlu0 %v1024
          %v1042 = vpop.xlane.xlu0 %1041
          %1043 = vadd.xlane.f32.xlu0 %v1025
          %v1044 = vpop.xlane.xlu0 %1043
          %1045 = vadd.xlane.f32.xlu0 %v1026
          %v1046 = vpop.xlane.xlu0 %1045
          %1047 = vadd.xlane.f32.xlu0 %v1027
          %v1048 = vpop.xlane.xlu0 %1047
          %1049 = vadd.xlane.f32.xlu0 %v1028
          %v1050 = vpop.xlane.xlu0 %1049
          %1051 = vadd.xlane.f32.xlu0 %v1029
          %v1052 = vpop.xlane.xlu0 %1051
          %1053 = vadd.xlane.f32.xlu0 %v1030
          %v1054 = vpop.xlane.xlu0 %1053
          %1055 = vadd.xlane.f32.xlu0 %v1031
          %v1056 = vpop.xlane.xlu0 %1055
          %1057 = vadd.xlane.f32.xlu0 %v1032
          %v1058 = vpop.xlane.xlu0 %1057
          %1059 = vadd.xlane.f32.xlu0 %v1033
          %v1060 = vpop.xlane.xlu0 %1059
          %1061 = vadd.xlane.f32.xlu0 %v1034
          %v1062 = vpop.xlane.xlu0 %1061
          %1063 = vadd.xlane.f32.xlu0 %v1035
          %v1064 = vpop.xlane.xlu0 %1063
          %1065 = vadd.xlane.f32.xlu0 %v1036
          %v1066 = vpop.xlane.xlu0 %1065
          %1067 = vadd.xlane.f32.xlu0 %v1037
          %v1068 = vpop.xlane.xlu0 %1067
          %1069 = vadd.xlane.f32.xlu0 %v1038
          %v1070 = vpop.xlane.xlu0 %1069
          %v1071 = vmax.f32 %v1040, 1e-24
          %v1072 = vmax.f32 %v1042, 1e-24
          %v1073 = vmax.f32 %v1044, 1e-24
          %v1074 = vmax.f32 %v1046, 1e-24
          %v1075 = vmax.f32 %v1048, 1e-24
          %v1076 = vmax.f32 %v1050, 1e-24
          %v1077 = vmax.f32 %v1052, 1e-24
          %v1078 = vmax.f32 %v1054, 1e-24
          %v1079 = vmax.f32 %v1056, 1e-24
          %v1080 = vmax.f32 %v1058, 1e-24
          %v1081 = vmax.f32 %v1060, 1e-24
          %v1082 = vmax.f32 %v1062, 1e-24
          %v1083 = vmax.f32 %v1064, 1e-24
          %v1084 = vmax.f32 %v1066, 1e-24
          %v1085 = vmax.f32 %v1068, 1e-24
          %v1086 = vmax.f32 %v1070, 1e-24
          %v1087 = vrsqrt.pop %v1071
          %v1088 = vrsqrt.pop %v1072
          %v1089 = vrsqrt.pop %v1073
          %v1090 = vrsqrt.pop %v1074
          %v1091 = vrsqrt.pop %v1075
          %v1092 = vrsqrt.pop %v1076
          %v1093 = vrsqrt.pop %v1077
          %v1094 = vrsqrt.pop %v1078
          %v1095 = vrsqrt.pop %v1079
          %v1096 = vrsqrt.pop %v1080
          %v1097 = vrsqrt.pop %v1081
          %v1098 = vrsqrt.pop %v1082
          %v1099 = vrsqrt.pop %v1083
          %v1100 = vrsqrt.pop %v1084
          %v1101 = vrsqrt.pop %v1085
          %v1102 = vrsqrt.pop %v1086
          %v1103 = vmul.f32 %v1087, 0.25
          %v1104 = vmul.f32 %v1088, 0.25
          %v1105 = vmul.f32 %v1089, 0.25
          %v1106 = vmul.f32 %v1090, 0.25
          %v1107 = vmul.f32 %v1091, 0.25
          %v1108 = vmul.f32 %v1092, 0.25
          %v1109 = vmul.f32 %v1093, 0.25
          %v1110 = vmul.f32 %v1094, 0.25
          %v1111 = vmul.f32 %v1095, 0.25
          %v1112 = vmul.f32 %v1096, 0.25
          %v1113 = vmul.f32 %v1097, 0.25
          %v1114 = vmul.f32 %v1098, 0.25
          %v1115 = vmul.f32 %v1099, 0.25
          %v1116 = vmul.f32 %v1100, 0.25
          %v1117 = vmul.f32 %v1101, 0.25
          %v1118 = vmul.f32 %v1102, 0.25
          %s1119 = scalar_lea.vmem [#allocation11], %s295
          %v1120 = vld [vmem:[%s1119] sm:$0xff]
          %v1121 = vld [vmem:[%s1119 + $0x8] sm:$0xff]
          %v1122 = vld [vmem:[%s1119 + $0x10] sm:$0xff]
          %v1123 = vld [vmem:[%s1119 + $0x18] sm:$0xff]
          %v1124 = vld [vmem:[%s1119 + $0x20] sm:$0xff]
          %v1125 = vld [vmem:[%s1119 + $0x28] sm:$0xff]
          %v1126 = vld [vmem:[%s1119 + $0x30] sm:$0xff]
          %v1127 = vld [vmem:[%s1119 + $0x38] sm:$0xff]
          %v1128 = vld [vmem:[%s1119 + $0x40] sm:$0xff]
          %v1129 = vld [vmem:[%s1119 + $0x48] sm:$0xff]
          %v1130 = vld [vmem:[%s1119 + $0x50] sm:$0xff]
          %v1131 = vld [vmem:[%s1119 + $0x58] sm:$0xff]
          %v1132 = vld [vmem:[%s1119 + $0x60] sm:$0xff]
          %v1133 = vld [vmem:[%s1119 + $0x68] sm:$0xff]
          %v1134 = vld [vmem:[%s1119 + $0x70] sm:$0xff]
          %v1135 = vld [vmem:[%s1119 + $0x78] sm:$0xff]
          %v1136 = vmul.f32 %v986, %v1103
          %v1137 = vmul.f32 %v987, %v1104
          %v1138 = vmul.f32 %v988, %v1105
          %v1139 = vmul.f32 %v989, %v1106
          %v1140 = vmul.f32 %v990, %v1107
          %v1141 = vmul.f32 %v991, %v1108
          %v1142 = vmul.f32 %v992, %v1109
          %v1143 = vmul.f32 %v993, %v1110
          %v1144 = vmul.f32 %v994, %v1111
          %v1145 = vmul.f32 %v995, %v1112
          %v1146 = vmul.f32 %v996, %v1113
          %v1147 = vmul.f32 %v997, %v1114
          %v1148 = vmul.f32 %v998, %v1115
          %v1149 = vmul.f32 %v999, %v1116
          %v1150 = vmul.f32 %v1000, %v1117
          %v1151 = vmul.f32 %v1001, %v1118
          %v1152 = vadd.f32 %v1120, %v1136
          %v1153 = vadd.f32 %v1121, %v1137
          %v1154 = vadd.f32 %v1122, %v1138
          %v1155 = vadd.f32 %v1123, %v1139
          %v1156 = vadd.f32 %v1124, %v1140
          %v1157 = vadd.f32 %v1125, %v1141
          %v1158 = vadd.f32 %v1126, %v1142
          %v1159 = vadd.f32 %v1127, %v1143
          %v1160 = vadd.f32 %v1128, %v1144
          %v1161 = vadd.f32 %v1129, %v1145
          %v1162 = vadd.f32 %v1130, %v1146
          %v1163 = vadd.f32 %v1131, %v1147
          %v1164 = vadd.f32 %v1132, %v1148
          %v1165 = vadd.f32 %v1133, %v1149
          %v1166 = vadd.f32 %v1134, %v1150
          %v1167 = vadd.f32 %v1135, %v1151
          %1168 = vst [vmem:[%s1119] sm:$0xff] %v1152
          %1169 = vst [vmem:[%s1119 + $0x8] sm:$0xff] %v1153
          %1170 = vst [vmem:[%s1119 + $0x10] sm:$0xff] %v1154
          %1171 = vst [vmem:[%s1119 + $0x18] sm:$0xff] %v1155
          %1172 = vst [vmem:[%s1119 + $0x20] sm:$0xff] %v1156
          %1173 = vst [vmem:[%s1119 + $0x28] sm:$0xff] %v1157
          %1174 = vst [vmem:[%s1119 + $0x30] sm:$0xff] %v1158
          %1175 = vst [vmem:[%s1119 + $0x38] sm:$0xff] %v1159
          %1176 = vst [vmem:[%s1119 + $0x40] sm:$0xff] %v1160
          %1177 = vst [vmem:[%s1119 + $0x48] sm:$0xff] %v1161
          %1178 = vst [vmem:[%s1119 + $0x50] sm:$0xff] %v1162
          %1179 = vst [vmem:[%s1119 + $0x58] sm:$0xff] %v1163
          %1180 = vst [vmem:[%s1119 + $0x60] sm:$0xff] %v1164
          %1181 = vst [vmem:[%s1119 + $0x68] sm:$0xff] %v1165
          %1182 = vst [vmem:[%s1119 + $0x70] sm:$0xff] %v1166
          %1183 = vst [vmem:[%s1119 + $0x78] sm:$0xff] %v1167
        $region68: #{tpu_custom_call.1} parent=31 // pred_fallthru
          _
        // Predicated region
        $region73: #{tpu_custom_call.1} parent=31 // pred_check
          %p1184 = pneg %p141
        $region74: #{tpu_custom_call.1} parent=31 // pred_check_branch
          %1186 = sbr.rel (%p1184) target = $region76
        $region75: #{tpu_custom_call.1} parent=31 // pred_region
          %s1188 = ssub.s32 4096, 4096
          %1189 = vsyncadd [#allocation7], %s1188
          %s1190 = sshll.u32 [#allocation11], 4
          %s1191 = int_to_ptr.vmem [resolvable:$true] %s1190
          %1196 = dma.vmem_to_hbm [thread:$0]  %s1191, 4096, %s3, [#allocation7], 128, 128, 8
        $region76: #{tpu_custom_call.1} parent=31 // pred_fallthru
          _
        // Predicated region
        $region77: #{tpu_custom_call.1} parent=31 // pred_check
          %p1197 = pneg %p141
        $region78: #{tpu_custom_call.1} parent=31 // pred_check_branch
          %1199 = sbr.rel (%p1197) target = $region80
        $region79: #{tpu_custom_call.1} parent=31 // pred_region
          %1200 = dma.done [#allocation7], 4096
        $region80: #{tpu_custom_call.1} parent=31 // pred_fallthru
          _
      $region32: #{tpu_custom_call.1} parent=5 // pred_fallthru
        _
      %p1201 = scmp.le.s32.totalorder 2, %s16
      // Predicated region
      $region81: #{tpu_custom_call.1} parent=5 // pred_check
        %p1202 = pneg %p1201
      $region82: #{tpu_custom_call.1} parent=5 // pred_check_branch
        %1204 = sbr.rel (%p1202) target = $region84
      $region83: #{tpu_custom_call.1} parent=5 // pred_region
        %s1205 = ssub.s32 %s16, 2
      $region84: #{tpu_custom_call.1} parent=5 // pred_fallthru
        _
    $region6: #{tpu_custom_call.1} parent=1 // loop_footer
      %s20 = sadd.s32 1, %s16
    $region7: #{tpu_custom_call.1} parent=1 // loop_footer_branch
      %15 = sbr.rel target = $region3
    $region8: #{tpu_custom_call.1} parent=1 // loop_exit
      _
    %1206 = vsyncpa [#allocation6], 1
    %s1207 = scalar_lea.sflag [#allocation6], 1
    %1208 = vsyncpa %s1207, 1
    %1209 = vsyncpa [#allocation9], 1
    %s1210 = scalar_lea.sflag [#allocation9], 1
    %1211 = vsyncpa %s1210, 1
    %1212 = vsyncpa [#allocation7], 1
    %s1213 = scalar_lea.sflag [#allocation7], 1
    %1214 = vsyncpa %s1213, 1

</llo_original>
